<compile_context>
chip_gen: v7x
topology: tpu7x:2x2x1
jax: 0.10.0
libtpu: 0.0.40
codegen_flags: <defaults>
</compile_context>

<pallas_src>
import functools
import random

import jax
import jax.numpy as jnp
from jax import lax
from jax.experimental import pallas as pl
from jax.experimental.pallas import tpu as pltpu

FILTER_SIZE = 3   # Evaluate.filter_size in the torch module
_FORCE_MODE = None  # set to "gather" or "onehot" to skip the build-time probe


# ---------------------------------------------------------------------------
# plain-JAX glue (matches patch_match.py helpers)
# ---------------------------------------------------------------------------
def offset_to_inds(offset_x, offset_y):
    _, _, h, w = offset_x.shape
    row_expand = jnp.arange(w, dtype=offset_x.dtype).reshape(1, 1, 1, w)
    col_expand = jnp.arange(h, dtype=offset_x.dtype).reshape(1, 1, h, 1)
    return (offset_y + col_expand) * w + offset_x + row_expand


def inds_to_offset(inds):
    _, _, h, w = inds.shape
    col = jnp.floor(inds / w)          # inds are exact non-negative integers stored as float
    row = inds - col * w
    row_expand = jnp.arange(w, dtype=inds.dtype).reshape(1, 1, 1, w)
    col_expand = jnp.arange(h, dtype=inds.dtype).reshape(1, 1, h, 1)
    return row - row_expand, col - col_expand


def propagation(offset_x, offset_y, propagation_type="horizontal"):
    """PropagationFaster: stack {left/up-shifted, identity, right/down-shifted} along num."""
    def expand(o):
        if propagation_type == "horizontal":
            z = jnp.zeros_like(o[:, :, :, :1])
            a = jnp.concatenate([z, o[:, :, :, :-1]], axis=3)
            b = jnp.concatenate([o[:, :, :, 1:], z], axis=3)
        else:
            z = jnp.zeros_like(o[:, :, :1, :])
            a = jnp.concatenate([z, o[:, :, :-1, :]], axis=2)
            b = jnp.concatenate([o[:, :, 1:, :], z], axis=2)
        return jnp.concatenate([a, o, b], axis=1)

    return expand(offset_x), expand(offset_y)


# ---------------------------------------------------------------------------
# Pallas kernel: per (batch, HW-tile) candidate scoring + softmax + top-k
# ---------------------------------------------------------------------------
def _evaluate_kernel(inv_temp_ref, left_ref, right_ref, inds_ref, corr_ref, sel_ref,
                     *, num3, k, mode):
    left = left_ref[...]                        # (C, T)   f32 query tile
    right = right_ref[...]                      # (C, HW)  f32 per-batch slab (resident across tiles)
    inds = inds_ref[...]                        # (num3, T) int32, absolute indices into [0, HW)
    c, t = left.shape
    hw = right.shape[1]
    inv_temp = inv_temp_ref[0]                  # SMEM scalar: 1 / temperature

    # --- per-candidate matching cost, kept as (1, T) register rows -------------------
    cost_rows = []
    if mode == "gather":
        # cost[i, p] = <left[:, p], right[:, inds[i, p]]> via a lane gather + channel reduce.
        # O(num3*C*T) work per tile, no (HW, HW) temporaries.
        for i in range(num3):
            idx = jnp.broadcast_to(inds[i:i + 1, :], (c, t))
            picked = jnp.take_along_axis(right, idx, axis=1)                     # (C, T)
            cost_rows.append(jnp.sum(left * picked, axis=0, keepdims=True) * inv_temp)
    else:
        # One-hot MXU select: picked = right @ onehot (contraction K = HW, full MXU depth).
        # onehot entries are exact 0/1; `right` is rounded to bf16 for the MXU, channel sum
        # accumulates in f32.  (Fallback path only; bf16 rounding of right is the sole
        # precision loss and is relative, independent of the 1/temperature scaling.)
        q_iota = lax.broadcasted_iota(jnp.int32, (hw, t), 0)                     # hoisted once
        right_bf = right.astype(jnp.bfloat16)
        for i in range(num3):
            onehot = (q_iota == inds[i:i + 1, :]).astype(jnp.bfloat16)           # (HW, T)
            picked = lax.dot_general(
                right_bf, onehot,
                dimension_numbers=(((1,), (0,)), ((), ())),
                preferred_element_type=jnp.float32)                              # (C, T)
            cost_rows.append(jnp.sum(left * picked, axis=0, keepdims=True) * inv_temp)

    # --- softmax over candidates: all elementwise across the register row list -------
    m = cost_rows[0]
    for i in range(1, num3):
        m = jnp.maximum(m, cost_rows[i])
    e_rows = [jnp.exp(cr - m) for cr in cost_rows]
    z = e_rows[0]
    for i in range(1, num3):
        z = z + e_rows[i]
    inv_z = pl.reciprocal(z, approx=True)                                        # EUP slot

    # --- top-k on raw cost (same per-column ordering as softmax); normalize only the k kept
    work = list(cost_rows)
    neg_inf = jnp.float32(-jnp.inf)
    corr_rows, sel_rows = [], []
    for _ in range(k):
        best_val = work[0]
        best_idx = jnp.zeros_like(inds[0:1, :])
        for i in range(1, num3):
            better = work[i] > best_val                         # strict '>' => first-max tie break
            best_val = jnp.where(better, work[i], best_val)
            best_idx = jnp.where(better, jnp.int32(i), best_idx)
        e_sel = e_rows[0]
        sel_val = inds[0:1, :]
        work[0] = jnp.where(best_idx == jnp.int32(0), neg_inf, work[0])
        for i in range(1, num3):
            hit = best_idx == jnp.int32(i)
            e_sel = jnp.where(hit, e_rows[i], e_sel)
            sel_val = jnp.where(hit, inds[i:i + 1, :], sel_val)
            work[i] = jnp.where(hit, neg_inf, work[i])
        corr_rows.append(e_sel * inv_z)
        sel_rows.append(sel_val)

    # --- one unmasked lane-dense store per output block -------------------------------
    corr_ref[...] = jnp.concatenate(corr_rows, axis=0)           # (k, T) f32
    sel_ref[...] = jnp.concatenate(sel_rows, axis=0)             # (k, T) int32


@functools.lru_cache(maxsize=None)
def _build_evaluate_call(b, c, hw_pad, num3, k, tile, mode):
    n_tiles = hw_pad // tile
    kernel = functools.partial(_evaluate_kernel, num3=num3, k=k, mode=mode)
    return pl.pallas_call(
        kernel,
        out_shape=(jax.ShapeDtypeStruct((b, k, hw_pad), jnp.float32),
                   jax.ShapeDtypeStruct((b, k, hw_pad), jnp.int32)),
        grid=(b, n_tiles),
        in_specs=[
            pl.BlockSpec(memory_space=pltpu.MemorySpace.SMEM),              # 1/temperature scalar
            pl.BlockSpec((None, c, tile), lambda bi, ti: (bi, 0, ti)),      # left  (B, C, HW)
            pl.BlockSpec((c, hw_pad), lambda bi, ti: (0, bi)),              # right (C, B*HW): per-batch
                                                                            #   slab, reused across ti
            pl.BlockSpec((None, num3, tile), lambda bi, ti: (bi, 0, ti)),   # inds  (B, num3, HW)
        ],
        out_specs=(
            pl.BlockSpec((None, k, tile), lambda bi, ti: (bi, 0, ti)),
            pl.BlockSpec((None, k, tile), lambda bi, ti: (bi, 0, ti)),
        ),
        compiler_params=pltpu.CompilerParams(
            dimension_semantics=("parallel", "parallel")),
    )


# ---------------------------------------------------------------------------
# build-time (shape-only, jit-safe) resolution of the candidate-select path
# ---------------------------------------------------------------------------
@functools.lru_cache(maxsize=None)
def _resolve_mode(b, c, hw_pad, num3, k, tile):
    if _FORCE_MODE is not None:
        return _FORCE_MODE
    try:
        call = _build_evaluate_call(b, c, hw_pad, num3, k, tile, "gather")
        args = (jax.ShapeDtypeStruct((1,), jnp.float32),
                jax.ShapeDtypeStruct((b, c, hw_pad), jnp.float32),
                jax.ShapeDtypeStruct((c, b * hw_pad), jnp.float32),
                jax.ShapeDtypeStruct((b, num3, hw_pad), jnp.int32))
        jax.jit(call).lower(*args).compile()     # AOT probe: no data, safe under jit tracing
        return "gather"
    except Exception:
        return "onehot"                          # MXU one-hot select fallback


def _round_up(x, m):
    return ((x + m - 1) // m) * m


def _pick_tile(hw_pad):
    for t in (1024, 512, 2048, 256, 128):        # prefer 512-2048; hw_pad is a multiple of 128
        if hw_pad % t == 0:
            return t
    return hw_pad


# ---------------------------------------------------------------------------
# Evaluate / PatchMatchOnce
# ---------------------------------------------------------------------------
def evaluate(left_features, right_features, offset_x, offset_y, temperature):
    """Evaluate module: returns (new_offset_x, new_offset_y, corr)."""
    b, num3, h, w = offset_x.shape
    c = left_features.shape[1]
    hw = h * w
    k = max(num3 // FILTER_SIZE, 1)

    matching_inds = offset_to_inds(offset_x, offset_y).reshape(b, num3, hw)
    # Clamp keeps per-batch gathers in bounds (the torch code relies on in-range indices;
    # out-of-frame offsets would be silently remapped here).
    matching_inds = jnp.clip(matching_inds, 0, hw - 1).astype(jnp.int32)

    hw_pad = _round_up(hw, 128)
    tile = _pick_tile(hw_pad)

    left = left_features
    right = right_features
    inds = matching_inds
    if hw_pad != hw:
        # Pad the flattened spatial axis to a multiple of 128 (lane constraint). Padded
        # query columns produce junk that is sliced off; index 0 keeps gathers in bounds.
        left = jnp.pad(left, ((0, 0), (0, 0), (0, hw_pad - hw)))
        inds = jnp.pad(inds, ((0, 0), (0, 0), (0, hw_pad - hw)))
        right = right_features.reshape(c, b, hw)
        right = jnp.pad(right, ((0, 0), (0, 0), (0, hw_pad - hw))).reshape(c, b * hw_pad)

    mode = _resolve_mode(b, c, hw_pad, num3, k, tile)
    call = _build_evaluate_call(b, c, hw_pad, num3, k, tile, mode)

    # 1/temperature travels as an SMEM scalar: no recompile when temperature anneals,
    # works with traced (jit) temperature values too.
    inv_temp = jnp.reshape(1.0 / jnp.asarray(temperature, dtype=jnp.float32), (1,))

    corr, sel = call(inv_temp, left, right, inds)
    corr = corr[:, :, :hw]
    sel = sel[:, :, :hw]

    matching_inds_sel = sel.astype(jnp.float32).reshape(b, k, h, w)
    new_offset_x, new_offset_y = inds_to_offset(matching_inds_sel)
    return new_offset_x, new_offset_y, corr


def patch_match_once(left_features, right_features, offset_x, offset_y, temperature):
    """PatchMatchOnce.forward (branch picked with host-side python random, as in torch)."""
    prob = random.random()
    if prob < 0.5:
        offset_x, offset_y = propagation(offset_x, offset_y, "horizontal")
        offset_x, offset_y, _ = evaluate(left_features, right_features, offset_x, offset_y, temperature)
        offset_x, offset_y = propagation(offset_x, offset_y, "vertical")
        offset_x, offset_y, corr = evaluate(left_features, right_features, offset_x, offset_y, temperature)
    else:
        offset_x, offset_y = propagation(offset_x, offset_y, "vertical")
        offset_x, offset_y, _ = evaluate(left_features, right_features, offset_x, offset_y, temperature)
        offset_x, offset_y = propagation(offset_x, offset_y, "horizontal")
        offset_x, offset_y, corr = evaluate(left_features, right_features, offset_x, offset_y, temperature)
    return offset_x, offset_y, corr


# ---------------------------------------------------------------------------
if __name__ == "__main__":
    random.seed(0)              # deterministic branch choice in PatchMatchOnce
    B, C, H, W = 2, 32, 16, 16
    NUM = 1                     # candidates kept per pixel
    TEMPERATURE = 0.01          # opt.temperature
    HW = H * W

    key = jax.random.PRNGKey(0)
    k1, k2, k3, k4 = jax.random.split(key, 4)

    left = jax.random.normal(k1, (B, C, HW), dtype=jnp.float32)
    left = left / (jnp.linalg.norm(left, axis=1, keepdims=True) + 1e-6)

    right_bchw = jax.random.normal(k2, (B, C, HW), dtype=jnp.float32)
    right_bchw = right_bchw / (jnp.linalg.norm(right_bchw, axis=1, keepdims=True) + 1e-6)
    # PatchMatchGRU feeds right_features as the flattened (C, B*HW) view.
    right = right_bchw.transpose(1, 0, 2).reshape(C, B * HW)

    # Initial offsets: random target positions kept 1 px from the border so that the
    # +-1 propagation shifts never produce out-of-range indices (same as torch usage).
    tx = jax.random.randint(k3, (B, NUM, H, W), 1, W - 1)
    ty = jax.random.randint(k4, (B, NUM, H, W), 1, H - 1)
    xs = jnp.arange(W).reshape(1, 1, 1, W)
    ys = jnp.arange(H).reshape(1, 1, H, 1)
    offset_x = (tx - xs).astype(jnp.float32)
    offset_y = (ty - ys).astype(jnp.float32)

    ox, oy, corr = patch_match_once(left, right, offset_x, offset_y, TEMPERATURE)
    jax.block_until_ready((ox, oy, corr))

    assert ox.shape == (B, NUM, H, W) and ox.dtype == jnp.float32
    assert oy.shape == (B, NUM, H, W) and oy.dtype == jnp.float32
    assert corr.shape == (B, NUM, HW) and corr.dtype == jnp.float32
    assert bool(jnp.all(jnp.isfinite(corr)))
    assert bool(jnp.all((corr > 0) & (corr <= 1.0 + 1e-5)))      # softmax probabilities
    print("KERNEL_OK")
</pallas_src>

<mosaic_0001>
module attributes {stable_mosaic.version = 11 : i64} {
  func.func @_evaluate_kernel(%arg0: i32, %arg1: i32, %arg2: memref<1xf32, #tpu.memory_space<smem>>, %arg3: memref<1x32x256xf32, #tpu.memory_space<vmem>>, %arg4: memref<32x256xf32, #tpu.memory_space<vmem>>, %arg5: memref<1x3x256xi32, #tpu.memory_space<vmem>>, %arg6: memref<1x1x256xf32, #tpu.memory_space<vmem>>, %arg7: memref<1x1x256xi32, #tpu.memory_space<vmem>>) attributes {dimension_semantics = [#tpu.dimension_semantics<parallel>, #tpu.dimension_semantics<parallel>], iteration_bounds = array<i64: 2, 1>, scalar_prefetch = 0 : i64, scratch_operands = 0 : i64, tpu.core_type = #tpu.core_type<tc>, window_params = [{transform_indices = @transform_0, window_bounds = array<i64: 1>}, {transform_indices = @transform_1, window_bounds = array<i64: 1, 32, 256>}, {transform_indices = @transform_2, window_bounds = array<i64: 32, 256>}, {transform_indices = @transform_3, window_bounds = array<i64: 1, 3, 256>}, {transform_indices = @transform_4, window_bounds = array<i64: 1, 1, 256>}, {transform_indices = @transform_5, window_bounds = array<i64: 1, 1, 256>}]} {
    %c0 = arith.constant 0 : index
    %c0_0 = arith.constant 0 : index
    %c0_1 = arith.constant 0 : index
    %0 = vector.load %arg3[%c0, %c0_0, %c0_1] : memref<1x32x256xf32, #tpu.memory_space<vmem>>, vector<1x32x256xf32>
    %1 = vector.shape_cast %0 : vector<1x32x256xf32> to vector<32x256xf32>
    %c0_2 = arith.constant 0 : index
    %c0_3 = arith.constant 0 : index
    %2 = vector.load %arg4[%c0_2, %c0_3] : memref<32x256xf32, #tpu.memory_space<vmem>>, vector<32x256xf32>
    %c0_4 = arith.constant 0 : index
    %c0_5 = arith.constant 0 : index
    %c0_6 = arith.constant 0 : index
    %3 = vector.load %arg5[%c0_4, %c0_5, %c0_6] : memref<1x3x256xi32, #tpu.memory_space<vmem>>, vector<1x3x256xi32>
    %4 = vector.shape_cast %3 : vector<1x3x256xi32> to vector<3x256xi32>
    %c0_7 = arith.constant 0 : index
    %5 = memref.load %arg2[%c0_7] : memref<1xf32, #tpu.memory_space<smem>>
    %6 = tpu.iota {dimensions = array<i32: 0>} : vector<256x256xi32>
    %7 = arith.truncf %2 : vector<32x256xf32> to vector<32x256xbf16>
    %8 = vector.extract_strided_slice %4 {offsets = [0, 0], sizes = [1, 256], strides = [1, 1]} : vector<3x256xi32> to vector<1x256xi32>
    %9 = vector.broadcast %8 : vector<1x256xi32> to vector<256x256xi32>
    %10 = arith.cmpi eq, %6, %9 : vector<256x256xi32>
    %11 = arith.extui %10 : vector<256x256xi1> to vector<256x256xi32>
    %12 = arith.sitofp %11 : vector<256x256xi32> to vector<256x256xf32>
    %13 = arith.truncf %12 : vector<256x256xf32> to vector<256x256xbf16>
    %cst = arith.constant dense<0.000000e+00> : vector<32x256xf32>
    %14 = tpu.matmul %7, %13, %cst {dimension_numbers = #tpu.dot_dimension_numbers<[1], [0], [0], [1], [0, 0, 1, 1], [], []>} : vector<32x256xbf16>, vector<256x256xbf16>, vector<32x256xf32> -> vector<32x256xf32>
    %15 = arith.mulf %1, %14 : vector<32x256xf32>
    %cst_8 = arith.constant dense<0.000000e+00> : vector<256xf32>
    %16 = vector.multi_reduction <add>, %15, %cst_8 [0] : vector<32x256xf32> to vector<256xf32>
    %17 = vector.shape_cast %16 : vector<256xf32> to vector<1x256xf32>
    %18 = vector.broadcast %5 : f32 to vector<1x256xf32>
    %19 = arith.mulf %17, %18 : vector<1x256xf32>
    %20 = vector.extract_strided_slice %4 {offsets = [1, 0], sizes = [1, 256], strides = [1, 1]} : vector<3x256xi32> to vector<1x256xi32>
    %21 = vector.broadcast %20 : vector<1x256xi32> to vector<256x256xi32>
    %22 = arith.cmpi eq, %6, %21 : vector<256x256xi32>
    %23 = arith.extui %22 : vector<256x256xi1> to vector<256x256xi32>
    %24 = arith.sitofp %23 : vector<256x256xi32> to vector<256x256xf32>
    %25 = arith.truncf %24 : vector<256x256xf32> to vector<256x256xbf16>
    %cst_9 = arith.constant dense<0.000000e+00> : vector<32x256xf32>
    %26 = tpu.matmul %7, %25, %cst_9 {dimension_numbers = #tpu.dot_dimension_numbers<[1], [0], [0], [1], [0, 0, 1, 1], [], []>} : vector<32x256xbf16>, vector<256x256xbf16>, vector<32x256xf32> -> vector<32x256xf32>
    %27 = arith.mulf %1, %26 : vector<32x256xf32>
    %cst_10 = arith.constant dense<0.000000e+00> : vector<256xf32>
    %28 = vector.multi_reduction <add>, %27, %cst_10 [0] : vector<32x256xf32> to vector<256xf32>
    %29 = vector.shape_cast %28 : vector<256xf32> to vector<1x256xf32>
    %30 = vector.broadcast %5 : f32 to vector<1x256xf32>
    %31 = arith.mulf %29, %30 : vector<1x256xf32>
    %32 = vector.extract_strided_slice %4 {offsets = [2, 0], sizes = [1, 256], strides = [1, 1]} : vector<3x256xi32> to vector<1x256xi32>
    %33 = vector.broadcast %32 : vector<1x256xi32> to vector<256x256xi32>
    %34 = arith.cmpi eq, %6, %33 : vector<256x256xi32>
    %35 = arith.extui %34 : vector<256x256xi1> to vector<256x256xi32>
    %36 = arith.sitofp %35 : vector<256x256xi32> to vector<256x256xf32>
    %37 = arith.truncf %36 : vector<256x256xf32> to vector<256x256xbf16>
    %cst_11 = arith.constant dense<0.000000e+00> : vector<32x256xf32>
    %38 = tpu.matmul %7, %37, %cst_11 {dimension_numbers = #tpu.dot_dimension_numbers<[1], [0], [0], [1], [0, 0, 1, 1], [], []>} : vector<32x256xbf16>, vector<256x256xbf16>, vector<32x256xf32> -> vector<32x256xf32>
    %39 = arith.mulf %1, %38 : vector<32x256xf32>
    %cst_12 = arith.constant dense<0.000000e+00> : vector<256xf32>
    %40 = vector.multi_reduction <add>, %39, %cst_12 [0] : vector<32x256xf32> to vector<256xf32>
    %41 = vector.shape_cast %40 : vector<256xf32> to vector<1x256xf32>
    %42 = vector.broadcast %5 : f32 to vector<1x256xf32>
    %43 = arith.mulf %41, %42 : vector<1x256xf32>
    %44 = arith.maximumf %19, %31 : vector<1x256xf32>
    %45 = arith.maximumf %44, %43 : vector<1x256xf32>
    %46 = arith.subf %19, %45 : vector<1x256xf32>
    %47 = math.exp %46 : vector<1x256xf32>
    %48 = arith.subf %31, %45 : vector<1x256xf32>
    %49 = math.exp %48 : vector<1x256xf32>
    %50 = arith.subf %43, %45 : vector<1x256xf32>
    %51 = math.exp %50 : vector<1x256xf32>
    %52 = arith.addf %47, %49 : vector<1x256xf32>
    %53 = arith.addf %52, %51 : vector<1x256xf32>
    %54 = tpu.reciprocal %53 {approx = true} : vector<1x256xf32> -> vector<1x256xf32>
    %c0_i32 = arith.constant 0 : i32
    %55 = vector.broadcast %c0_i32 : i32 to vector<1x256xi32>
    %56 = arith.cmpf ogt, %31, %19 : vector<1x256xf32>
    %57 = arith.select %56, %31, %19 : vector<1x256xi1>, vector<1x256xf32>
    %c1_i32 = arith.constant 1 : i32
    %58 = vector.broadcast %c1_i32 : i32 to vector<1x256xi32>
    %59 = arith.select %56, %58, %55 : vector<1x256xi1>, vector<1x256xi32>
    %60 = arith.cmpf ogt, %43, %57 : vector<1x256xf32>
    %c2_i32 = arith.constant 2 : i32
    %61 = vector.broadcast %c2_i32 : i32 to vector<1x256xi32>
    %62 = arith.select %60, %61, %59 : vector<1x256xi1>, vector<1x256xi32>
    %63 = vector.extract_strided_slice %4 {offsets = [0, 0], sizes = [1, 256], strides = [1, 1]} : vector<3x256xi32> to vector<1x256xi32>
    %c1_i32_13 = arith.constant 1 : i32
    %64 = vector.broadcast %c1_i32_13 : i32 to vector<1x256xi32>
    %65 = arith.cmpi eq, %62, %64 : vector<1x256xi32>
    %66 = arith.select %65, %49, %47 : vector<1x256xi1>, vector<1x256xf32>
    %67 = vector.extract_strided_slice %4 {offsets = [1, 0], sizes = [1, 256], strides = [1, 1]} : vector<3x256xi32> to vector<1x256xi32>
    %68 = arith.select %65, %67, %63 : vector<1x256xi1>, vector<1x256xi32>
    %c2_i32_14 = arith.constant 2 : i32
    %69 = vector.broadcast %c2_i32_14 : i32 to vector<1x256xi32>
    %70 = arith.cmpi eq, %62, %69 : vector<1x256xi32>
    %71 = arith.select %70, %51, %66 : vector<1x256xi1>, vector<1x256xf32>
    %72 = vector.extract_strided_slice %4 {offsets = [2, 0], sizes = [1, 256], strides = [1, 1]} : vector<3x256xi32> to vector<1x256xi32>
    %73 = arith.select %70, %72, %68 : vector<1x256xi1>, vector<1x256xi32>
    %74 = arith.mulf %71, %54 : vector<1x256xf32>
    %c0_15 = arith.constant 0 : index
    %c0_16 = arith.constant 0 : index
    %c0_17 = arith.constant 0 : index
    %75 = vector.load %arg6[%c0_15, %c0_16, %c0_17] : memref<1x1x256xf32, #tpu.memory_space<vmem>>, vector<1x1x256xf32>
    %76 = vector.shape_cast %75 : vector<1x1x256xf32> to vector<1x256xf32>
    %77 = vector.shape_cast %74 : vector<1x256xf32> to vector<1x1x256xf32>
    tpu.vector_store %arg6[%c0_15, %c0_16, %c0_17], %77 {strides = array<i32>} : memref<1x1x256xf32, #tpu.memory_space<vmem>>, vector<1x1x256xf32>,
    %c0_18 = arith.constant 0 : index
    %c0_19 = arith.constant 0 : index
    %c0_20 = arith.constant 0 : index
    %78 = vector.load %arg7[%c0_18, %c0_19, %c0_20] : memref<1x1x256xi32, #tpu.memory_space<vmem>>, vector<1x1x256xi32>
    %79 = vector.shape_cast %78 : vector<1x1x256xi32> to vector<1x256xi32>
    %80 = vector.shape_cast %73 : vector<1x256xi32> to vector<1x1x256xi32>
    tpu.vector_store %arg7[%c0_18, %c0_19, %c0_20], %80 {strides = array<i32>} : memref<1x1x256xi32, #tpu.memory_space<vmem>>, vector<1x1x256xi32>,
    return
  }
  func.func @transform_0(%arg0: i32, %arg1: i32) -> i32 {
    %c0_i32 = arith.constant 0 : i32
    %c0_i32_0 = arith.constant 0 : i32
    return %c0_i32 : i32
  }
  func.func @transform_1(%arg0: i32, %arg1: i32) -> (i32, i32, i32) {
    %c0_i32 = arith.constant 0 : i32
    %c0_i32_0 = arith.constant 0 : i32
    return %arg0, %c0_i32, %arg1 : i32, i32, i32
  }
  func.func @transform_2(%arg0: i32, %arg1: i32) -> (i32, i32) {
    %c0_i32 = arith.constant 0 : i32
    %c0_i32_0 = arith.constant 0 : i32
    return %c0_i32, %arg0 : i32, i32
  }
  func.func @transform_3(%arg0: i32, %arg1: i32) -> (i32, i32, i32) {
    %c0_i32 = arith.constant 0 : i32
    %c0_i32_0 = arith.constant 0 : i32
    return %arg0, %c0_i32, %arg1 : i32, i32, i32
  }
  func.func @transform_4(%arg0: i32, %arg1: i32) -> (i32, i32, i32) {
    %c0_i32 = arith.constant 0 : i32
    %c0_i32_0 = arith.constant 0 : i32
    return %arg0, %c0_i32, %arg1 : i32, i32, i32
  }
  func.func @transform_5(%arg0: i32, %arg1: i32) -> (i32, i32, i32) {
    %c0_i32 = arith.constant 0 : i32
    %c0_i32_0 = arith.constant 0 : i32
    return %arg0, %c0_i32, %arg1 : i32, i32, i32
  }
}

</mosaic_0001>

<llo_original>
// kernel: tpu_custom_call.1
$region0: #{tpu_custom_call.1}
  #allocation0 [shape = 'u32[]', space=smem, size = 0x4, offset = 0x4, fixed_abs, tag = 'smem constant byte address 0x4 - core index']
  #allocation1 [shape = 'u32[144,128]{1,0:T(1,128)}', space=vmem, size = 0x12000, scoped, tag = 'internal scratch']
  #allocation2 [shape = 'f32[1]{0:T(128)S(6)}', space=smem, size = 0x200, scoped, tag = 'scoped memory for tpu_custom_call.1']
  %s0 = inlined_call_operand.<no memory space> [shape: f32[1], index: 0, kind: input, shape index: {}]
  %s1 = inlined_call_operand.hbm [shape: f32[2,32,256], index: 1, kind: input, shape index: {}]
  %s2 = inlined_call_operand.hbm [shape: f32[32,512], index: 2, kind: input, shape index: {}]
  %s3 = inlined_call_operand.vmem [shape: s32[2,3,256], index: 3, kind: input, shape index: {}]
  %s4 = inlined_call_operand.hbm [shape: f32[2,1,256], index: 4, kind: output, shape index: {0}]
  %s5 = inlined_call_operand.hbm [shape: s32[2,1,256], index: 5, kind: output, shape index: {1}]
  %6 = xla_tuple %s4, %s5
  %s7 = sld [smem:[#allocation0]]
  $region65: #{tpu_custom_call.1} parent=0
    _
  %s9 = ssub.s32 1, %s7
  %s10 = scalar_select 0, %s9, %s7
  %11 = sst [smem:[#allocation2]] %s0
  $region1: #{tpu_custom_call.1} parent=0
    #allocation3 [shape = 'u8[65536]{0}', space=vmem, size = 0x10000, scoped, tag = 'input window, operand 1']
    #allocation4 [shape = 's32[2]{0}', space=sflag, size = 0x8, scoped, tag = 'scoped memory for tpu_custom_call.1']
    #allocation5 [shape = 's32[2]{0}', space=sflag, size = 0x8, scoped, tag = 'scoped memory for tpu_custom_call.1']
    #allocation6 [shape = 'u8[65536]{0}', space=vmem, size = 0x10000, scoped, tag = 'input window, operand 2']
    #allocation7 [shape = 's32[2]{0}', space=sflag, size = 0x8, scoped, tag = 'scoped memory for tpu_custom_call.1']
    #allocation8 [shape = 'u8[2048]{0}', space=vmem, size = 0x800, scoped, tag = 'output window, operand 0']
    #allocation9 [shape = 'u8[2048]{0}', space=vmem, size = 0x800, scoped, tag = 'output window, operand 1']
    #allocation10 [shape = 's32[2]{0}', space=sflag, size = 0x8, scoped, tag = 'scoped memory for tpu_custom_call.1']
    %12 = vsyncpa [#allocation4], 0
    %s13 = scalar_lea.sflag [#allocation4], 1
    %14 = vsyncpa %s13, 0
    %15 = vsyncpa [#allocation7], 0
    %s16 = scalar_lea.sflag [#allocation7], 1
    %17 = vsyncpa %s16, 0
    %18 = vsyncpa [#allocation5], 0
    %s19 = scalar_lea.sflag [#allocation5], 1
    %20 = vsyncpa %s19, 0
    %21 = vsyncpa [#allocation10], 0
    %s22 = scalar_lea.sflag [#allocation10], 1
    %23 = vsyncpa %s22, 0
    loop: start=0, step=1, limit=4
    $region2: #{tpu_custom_call.1} parent=1 // loop_pre_header
      _
    $region3: #{tpu_custom_call.1} parent=1 // loop_header
      %s25 = sphi 0, %s29
      %p26 = scmp.ge.s32.totalorder %s25, 4
      %s32 = sphi 0, %s44
      %s33 = sphi 0, %s40
      %s34 = sphi 0, %s32
      %s35 = sphi 0, %s33
      %s36 = sphi 0, %s34
      %s37 = sphi 0, %s35
      %s45 = sphi 0, %s45
      %s47 = sphi 0, %s45
      %s48 = sphi 0, %s47
      %s62 = sphi 0, %s48
      %s70 = sphi 0, %s72
      %s73 = sphi 0, %s70
      %s74 = sphi 0, %s73
      %s90 = sphi 0, %s74
      %s96 = sphi 0, %s98
      %s99 = sphi 0, %s96
      %s100 = sphi 0, %s99
      %s116 = sphi 0, %s100
      %s124 = sphi 0, %s126
      %s127 = sphi 0, %s124
      %s128 = sphi 0, %s127
      %s144 = sphi 0, %s128
      %s152 = sphi 0, %s154
      %s155 = sphi 0, %s152
      %s156 = sphi 0, %s155
      %s172 = sphi 0, %s156
      %s180 = sphi 0, %s182
      %s183 = sphi 0, %s180
      %s184 = sphi 0, %s183
      %s200 = sphi 0, %s184
    $region4: #{tpu_custom_call.1} parent=1 // loop_header_branch
      %28 = sbr.rel (%p26) target = $region8
    $region5: #{tpu_custom_call.1} parent=1 // loop_body
      %s30 = ssub.s32 %s25, 1
      %s31 = ssub.s32 %s25, 2
      %s38 = sadd.s32 1, %s33
      %p39 = scmp.ge.s32.totalorder %s38, 1
      %s40 = scalar_select %p39, 0, %s38
      %s41 = sadd.s32 1, %s32
      %s42 = scalar_select %p39, %s41, %s32
      %p43 = scmp.ge.s32.totalorder %s42, 2
      %s44 = scalar_select %p43, 0, %s42
      %s46 = sadd.s32 %s45, 1
      %p49 = scmp.eq.s32.totalorder %s25, 1
      %p50 = scmp.ne.s32.totalorder %s45, %s47
      %p51 = scmp.eq.s32.totalorder %s25, 0
      %p52 = por %p50, %p51
      %p53 = scmp.ne.s32.totalorder %s45, %s47
      %p54 = scmp.eq.s32.totalorder %s30, 1
      %p55 = por %p53, %p54
      %p56 = scmp.ne.s32.totalorder %s47, %s48
      %p57 = scmp.eq.s32.totalorder %s30, 0
      %p58 = por %p56, %p57
      %p59 = scmp.ne.s32.totalorder %s47, %s48
      %p60 = scmp.eq.s32.totalorder %s31, 1
      %p61 = por %p59, %p60
      %p63 = scmp.ne.s32.totalorder %s48, %s62
      %p64 = scmp.eq.s32.totalorder %s31, 0
      %p65 = por %p63, %p64
      %s66 = ssub.s32 %s32, %s44
      %s67 = ssub.s32 %s33, %s40
      %s68 = sor.u32 %s66, %s67
      %p69 = scmp.eq.s32.totalorder %s68, 0
      %s71 = sadd.s32 %s70, 1
      %s72 = scalar_select %p69, %s70, %s71
      %p75 = pneg %p69
      %p76 = scmp.eq.s32.totalorder %s25, 1
      %p77 = por %p75, %p76
      %p78 = scmp.ne.s32.totalorder %s70, %s73
      %p79 = scmp.eq.s32.totalorder %s25, 0
      %p80 = por %p78, %p79
      %p81 = scmp.ne.s32.totalorder %s70, %s73
      %p82 = scmp.eq.s32.totalorder %s30, 1
      %p83 = por %p81, %p82
      %p84 = scmp.ne.s32.totalorder %s73, %s74
      %p85 = scmp.eq.s32.totalorder %s30, 0
      %p86 = por %p84, %p85
      %p87 = scmp.ne.s32.totalorder %s73, %s74
      %p88 = scmp.eq.s32.totalorder %s31, 1
      %p89 = por %p87, %p88
      %p91 = scmp.ne.s32.totalorder %s74, %s90
      %p92 = scmp.eq.s32.totalorder %s31, 0
      %p93 = por %p91, %p92
      %s94 = ssub.s32 %s32, %s44
      %p95 = scmp.eq.s32.totalorder %s94, 0
      %s97 = sadd.s32 %s96, 1
      %s98 = scalar_select %p95, %s96, %s97
      %p101 = pneg %p95
      %p102 = scmp.eq.s32.totalorder %s25, 1
      %p103 = por %p101, %p102
      %p104 = scmp.ne.s32.totalorder %s96, %s99
      %p105 = scmp.eq.s32.totalorder %s25, 0
      %p106 = por %p104, %p105
      %p107 = scmp.ne.s32.totalorder %s96, %s99
      %p108 = scmp.eq.s32.totalorder %s30, 1
      %p109 = por %p107, %p108
      %p110 = scmp.ne.s32.totalorder %s99, %s100
      %p111 = scmp.eq.s32.totalorder %s30, 0
      %p112 = por %p110, %p111
      %p113 = scmp.ne.s32.totalorder %s99, %s100
      %p114 = scmp.eq.s32.totalorder %s31, 1
      %p115 = por %p113, %p114
      %p117 = scmp.ne.s32.totalorder %s100, %s116
      %p118 = scmp.eq.s32.totalorder %s31, 0
      %p119 = por %p117, %p118
      %s120 = ssub.s32 %s32, %s44
      %s121 = ssub.s32 %s33, %s40
      %s122 = sor.u32 %s120, %s121
      %p123 = scmp.eq.s32.totalorder %s122, 0
      %s125 = sadd.s32 %s124, 1
      %s126 = scalar_select %p123, %s124, %s125
      %p129 = pneg %p123
      %p130 = scmp.eq.s32.totalorder %s25, 1
      %p131 = por %p129, %p130
      %p132 = scmp.ne.s32.totalorder %s124, %s127
      %p133 = scmp.eq.s32.totalorder %s25, 0
      %p134 = por %p132, %p133
      %p135 = scmp.ne.s32.totalorder %s124, %s127
      %p136 = scmp.eq.s32.totalorder %s30, 1
      %p137 = por %p135, %p136
      %p138 = scmp.ne.s32.totalorder %s127, %s128
      %p139 = scmp.eq.s32.totalorder %s30, 0
      %p140 = por %p138, %p139
      %p141 = scmp.ne.s32.totalorder %s127, %s128
      %p142 = scmp.eq.s32.totalorder %s31, 1
      %p143 = por %p141, %p142
      %p145 = scmp.ne.s32.totalorder %s128, %s144
      %p146 = scmp.eq.s32.totalorder %s31, 0
      %p147 = por %p145, %p146
      %s148 = ssub.s32 %s32, %s44
      %s149 = ssub.s32 %s33, %s40
      %s150 = sor.u32 %s148, %s149
      %p151 = scmp.eq.s32.totalorder %s150, 0
      %s153 = sadd.s32 %s152, 1
      %s154 = scalar_select %p151, %s152, %s153
      %p157 = pneg %p151
      %p158 = scmp.eq.s32.totalorder %s25, 1
      %p159 = por %p157, %p158
      %p160 = scmp.ne.s32.totalorder %s152, %s155
      %p161 = scmp.eq.s32.totalorder %s25, 0
      %p162 = por %p160, %p161
      %p163 = scmp.ne.s32.totalorder %s152, %s155
      %p164 = scmp.eq.s32.totalorder %s30, 1
      %p165 = por %p163, %p164
      %p166 = scmp.ne.s32.totalorder %s155, %s156
      %p167 = scmp.eq.s32.totalorder %s30, 0
      %p168 = por %p166, %p167
      %p169 = scmp.ne.s32.totalorder %s155, %s156
      %p170 = scmp.eq.s32.totalorder %s31, 1
      %p171 = por %p169, %p170
      %p173 = scmp.ne.s32.totalorder %s156, %s172
      %p174 = scmp.eq.s32.totalorder %s31, 0
      %p175 = por %p173, %p174
      %s176 = ssub.s32 %s32, %s44
      %s177 = ssub.s32 %s33, %s40
      %s178 = sor.u32 %s176, %s177
      %p179 = scmp.eq.s32.totalorder %s178, 0
      %s181 = sadd.s32 %s180, 1
      %s182 = scalar_select %p179, %s180, %s181
      %p185 = pneg %p179
      %p186 = scmp.eq.s32.totalorder %s25, 1
      %p187 = por %p185, %p186
      %p188 = scmp.ne.s32.totalorder %s180, %s183
      %p189 = scmp.eq.s32.totalorder %s25, 0
      %p190 = por %p188, %p189
      %p191 = scmp.ne.s32.totalorder %s180, %s183
      %p192 = scmp.eq.s32.totalorder %s30, 1
      %p193 = por %p191, %p192
      %p194 = scmp.ne.s32.totalorder %s183, %s184
      %p195 = scmp.eq.s32.totalorder %s30, 0
      %p196 = por %p194, %p195
      %p197 = scmp.ne.s32.totalorder %s183, %s184
      %p198 = scmp.eq.s32.totalorder %s31, 1
      %p199 = por %p197, %p198
      %p201 = scmp.ne.s32.totalorder %s184, %s200
      %p202 = scmp.eq.s32.totalorder %s31, 0
      %p203 = por %p201, %p202
      %p204 = scmp.le.s32.totalorder 1, %s25
      %p205 = scmp.lt.s32.totalorder %s25, 3
      %p206 = pnand %p204, %p205
      %p207 = pneg %p206
      // Predicated region
      $region9: #{tpu_custom_call.1} parent=5 // pred_check
        _
      $region10: #{tpu_custom_call.1} parent=5 // pred_check_branch
        %209 = sbr.rel (%p206) target = $region12
      $region11: #{tpu_custom_call.1} parent=5 // pred_region
        %s210 = ssub.s32 %s25, 1
        // Predicated region
        $region13: #{tpu_custom_call.1} parent=11 // pred_check
          %p211 = pneg %p58
        $region14: #{tpu_custom_call.1} parent=11 // pred_check_branch
          %213 = sbr.rel (%p211) target = $region16
        $region15: #{tpu_custom_call.1} parent=11 // pred_region
          _
        $region16: #{tpu_custom_call.1} parent=11 // pred_fallthru
          _
      $region12: #{tpu_custom_call.1} parent=5 // pred_fallthru
        _
      %p214 = scmp.lt.s32.totalorder %s25, 2
      // Predicated region
      $region17: #{tpu_custom_call.1} parent=5 // pred_check
        %p215 = pneg %p214
      $region18: #{tpu_custom_call.1} parent=5 // pred_check_branch
        %217 = sbr.rel (%p215) target = $region20
      $region19: #{tpu_custom_call.1} parent=5 // pred_region
        // Predicated region
        $region21: #{tpu_custom_call.1} parent=19 // pred_check
          %p218 = pneg %p80
        $region22: #{tpu_custom_call.1} parent=19 // pred_check_branch
          %220 = sbr.rel (%p218) target = $region24
        $region23: #{tpu_custom_call.1} parent=19 // pred_region
          %s221 = sand.u32 %s70, 1
          %s222 = scalar_lea.sflag [#allocation4], %s221
          %s223 = sand.u32 %s70, 1
          %s224 = smul.addr %s223, 64
          %s225 = scalar_lea.vmem [#allocation3], %s224
          %s226 = smul.u32 2, %s33
          %s228 = ssub.s32 1024, 1024
          %229 = vsyncadd %s222, %s228
          %s230 = smul.addr %s32, 8
          %s231 = sadd.s32 %s226, %s230
          %s232 = smul.addr %s231, 128
          %s233 = scalar_lea.hbm %s1, %s232
          %s234 = sshll.u32 %s225, 4
          %s235 = int_to_ptr.vmem [resolvable:$true] %s234
          %240 = dma.hbm_to_vmem [thread:$0]  %s233, 1024, %s235, %s222, 256, 256, 16
        $region24: #{tpu_custom_call.1} parent=19 // pred_fallthru
          _
        // Predicated region
        $region25: #{tpu_custom_call.1} parent=19 // pred_check
          %p241 = pneg %p106
        $region26: #{tpu_custom_call.1} parent=19 // pred_check_branch
          %243 = sbr.rel (%p241) target = $region28
        $region27: #{tpu_custom_call.1} parent=19 // pred_region
          %s244 = sand.u32 %s96, 1
          %s245 = scalar_lea.sflag [#allocation7], %s244
          %s246 = sand.u32 %s96, 1
          %s247 = smul.addr %s246, 64
          %s248 = scalar_lea.vmem [#allocation6], %s247
          %s249 = smul.u32 2, %s32
          %s251 = ssub.s32 1024, 1024
          %252 = vsyncadd %s245, %s251
          %s253 = smul.addr %s249, 128
          %s254 = scalar_lea.hbm %s2, %s253
          %s255 = sshll.u32 %s248, 4
          %s256 = int_to_ptr.vmem [resolvable:$true] %s255
          %261 = dma.hbm_to_vmem [thread:$0]  %s254, 1024, %s256, %s245, 512, 256, 16
        $region28: #{tpu_custom_call.1} parent=19 // pred_fallthru
          _
        // Predicated region
        $region29: #{tpu_custom_call.1} parent=19 // pred_check
          %p262 = pneg %p134
        $region30: #{tpu_custom_call.1} parent=19 // pred_check_branch
          %264 = sbr.rel (%p262) target = $region32
        $region31: #{tpu_custom_call.1} parent=19 // pred_region
          %s265 = smul.u32 2, %s33
          %p266 = scmp.lt.s32.totalorder %s32, 1
          %s267 = scalar_select %p266, %s32, 1
          %p268 = scmp.lt.s32.totalorder %s265, 1
          %s269 = scalar_select %p268, %s265, 1
          %s270 = smul.addr %s267, 2
          %s271 = sadd.s32 %s269, %s270
          %s272 = smul.addr %s271, 4
          %s273 = scalar_lea.vmem %s3, %s272
          %s274 = smul.u32 2, %s33
        $region32: #{tpu_custom_call.1} parent=19 // pred_fallthru
          _
      $region20: #{tpu_custom_call.1} parent=5 // pred_fallthru
        _
      %p275 = scmp.le.s32.totalorder 1, %s25
      %p276 = scmp.lt.s32.totalorder %s25, 3
      %p277 = pnand %p275, %p276
      %p278 = pneg %p277
      // Predicated region
      $region33: #{tpu_custom_call.1} parent=5 // pred_check
        _
      $region34: #{tpu_custom_call.1} parent=5 // pred_check_branch
        %280 = sbr.rel (%p277) target = $region36
      $region35: #{tpu_custom_call.1} parent=5 // pred_region
        %s281 = ssub.s32 %s25, 1
        %s282 = sand.u32 %s73, 1
        %s283 = scalar_lea.sflag [#allocation4], %s282
        %s284 = sand.u32 %s73, 1
        %s285 = smul.addr %s284, 64
        %s286 = scalar_lea.vmem [#allocation3], %s285
        // Predicated region
        $region37: #{tpu_custom_call.1} parent=35 // pred_check
          %p287 = pneg %p86
        $region38: #{tpu_custom_call.1} parent=35 // pred_check_branch
          %289 = sbr.rel (%p287) target = $region40
        $region39: #{tpu_custom_call.1} parent=35 // pred_region
          %290 = dma.done %s283, 1024
        $region40: #{tpu_custom_call.1} parent=35 // pred_fallthru
          _
        %s291 = sand.u32 %s99, 1
        %s292 = scalar_lea.sflag [#allocation7], %s291
        %s293 = sand.u32 %s99, 1
        %s294 = smul.addr %s293, 64
        %s295 = scalar_lea.vmem [#allocation6], %s294
        // Predicated region
        $region41: #{tpu_custom_call.1} parent=35 // pred_check
          %p296 = pneg %p112
        $region42: #{tpu_custom_call.1} parent=35 // pred_check_branch
          %298 = sbr.rel (%p296) target = $region44
        $region43: #{tpu_custom_call.1} parent=35 // pred_region
          %299 = dma.done %s292, 1024
        $region44: #{tpu_custom_call.1} parent=35 // pred_fallthru
          _
        %p300 = pneg %p58
        %p301 = pneg %p55
        %s302 = sand.u32 %s73, 1
        %s303 = scalar_lea.sflag [#allocation4], %s302
        %s304 = sand.u32 %s73, 1
        %s305 = smul.addr %s304, 64
        %s306 = scalar_lea.vmem [#allocation3], %s305
        %p307 = pneg %p86
        %p308 = pneg %p83
        %s309 = sand.u32 %s99, 1
        %s310 = scalar_lea.sflag [#allocation7], %s309
        %s311 = sand.u32 %s99, 1
        %s312 = smul.addr %s311, 64
        %s313 = scalar_lea.vmem [#allocation6], %s312
        %p314 = pneg %p112
        %p315 = pneg %p109
        %s316 = smul.u32 2, %s35
        %p317 = scmp.lt.s32.totalorder %s34, 1
        %s318 = scalar_select %p317, %s34, 1
        %p319 = scmp.lt.s32.totalorder %s316, 1
        %s320 = scalar_select %p319, %s316, 1
        %s321 = smul.addr %s318, 2
        %s322 = sadd.s32 %s320, %s321
        %s323 = smul.addr %s322, 4
        %s324 = scalar_lea.vmem %s3, %s323
        %p325 = pneg %p140
        %p326 = pneg %p137
        %p327 = pneg %p168
        %p328 = pneg %p165
        %s329 = sand.u32 %s155, 1
        %s330 = scalar_lea.sflag [#allocation5], %s329
        %s331 = sand.u32 %s155, 1
        %s332 = smul.addr %s331, 2
        %s333 = scalar_lea.vmem [#allocation8], %s332
        %p334 = pneg %p196
        %p335 = pneg %p193
        %s336 = sand.u32 %s183, 1
        %s337 = scalar_lea.sflag [#allocation10], %s336
        %s338 = sand.u32 %s183, 1
        %s339 = smul.addr %s338, 2
        %s340 = scalar_lea.vmem [#allocation9], %s339
        %s341 = smul.u32 2, %s35
        %s342 = smul.u32 2, %s34
        %s343 = smul.u32 2, %s35
        %p344 = scmp.lt.s32.totalorder %s34, 1
        %s345 = scalar_select %p344, %s34, 1
        %p346 = scmp.lt.s32.totalorder %s343, 1
        %s347 = scalar_select %p346, %s343, 1
        %s348 = smul.addr %s345, 2
        %s349 = sadd.s32 %s347, %s348
        %s350 = smul.addr %s349, 4
        %s351 = scalar_lea.vmem %s3, %s350
        %s352 = smul.u32 2, %s35
        %s353 = smul.u32 2, %s35
        %s354 = smul.u32 2, %s35
        %v355 = vld [vmem:[%s286] sm:$0xff]
        %v356 = vld [vmem:[%s286 + $0x8] sm:$0xff]
        %v357 = vld [vmem:[%s286 + $0x10] sm:$0xff]
        %v358 = vld [vmem:[%s286 + $0x18] sm:$0xff]
        %v359 = vld [vmem:[%s286 + $0x20] sm:$0xff]
        %v360 = vld [vmem:[%s286 + $0x28] sm:$0xff]
        %v361 = vld [vmem:[%s286 + $0x30] sm:$0xff]
        %v362 = vld [vmem:[%s286 + $0x38] sm:$0xff]
        %v363 = vld [vmem:[%s295] sm:$0xff]
        %v364 = vld [vmem:[%s295 + $0x8] sm:$0xff]
        %v365 = vld [vmem:[%s295 + $0x10] sm:$0xff]
        %v366 = vld [vmem:[%s295 + $0x18] sm:$0xff]
        %v367 = vld [vmem:[%s295 + $0x20] sm:$0xff]
        %v368 = vld [vmem:[%s295 + $0x28] sm:$0xff]
        %v369 = vld [vmem:[%s295 + $0x30] sm:$0xff]
        %v370 = vld [vmem:[%s295 + $0x38] sm:$0xff]
        %v371 = vld [vmem:[%s351] sm:$0x77]
        %s372 = sld [smem:[#allocation2]]
        %v373 = vlaneseq
        %v374 = vshrl.u32 %v373, 7
        %v375 = vadd.s32 %v374, 8
        %v376 = vadd.s32 %v374, 16
        %v377 = vadd.s32 %v374, 24
        %v378 = vadd.s32 %v374, 32
        %v379 = vadd.s32 %v374, 40
        %v380 = vadd.s32 %v374, 48
        %v381 = vadd.s32 %v374, 56
        %v382 = vadd.s32 %v374, 64
        %v383 = vadd.s32 %v374, 72
        %v384 = vadd.s32 %v374, 80
        %v385 = vadd.s32 %v374, 88
        %v386 = vadd.s32 %v374, 96
        %v387 = vadd.s32 %v374, 104
        %v388 = vadd.s32 %v374, 112
        %v389 = vadd.s32 %v374, 120
        %v390 = vadd.s32 %v374, 128
        %v391 = vadd.s32 %v374, 136
        %v392 = vadd.s32 %v374, 144
        %v393 = vadd.s32 %v374, 152
        %v394 = vadd.s32 %v374, 160
        %v395 = vadd.s32 %v374, 168
        %v396 = vadd.s32 %v374, 176
        %v397 = vadd.s32 %v374, 184
        %v398 = vadd.s32 %v374, 192
        %v399 = vadd.s32 %v374, 200
        %v400 = vadd.s32 %v374, 208
        %v401 = vadd.s32 %v374, 216
        %v402 = vadd.s32 %v374, 224
        %v403 = vadd.s32 %v374, 232
        %v404 = vadd.s32 %v374, 240
        %v405 = vadd.s32 %v374, 248
        %v406 = vpack.c.bf16 %v365, %v363
        %v407 = vpack.c.bf16 %v366, %v364
        %v408 = vpack.c.bf16 %v369, %v367
        %v409 = vpack.c.bf16 %v370, %v368
        %v410 = vlaneseq
        %v411 = vshrl.u32 %v410, 7
        %v412 = vsub.s32 0, %v411
        %v413 = vrot.slane %v371, %v412
        %v414 = vlaneseq
        %v415 = vshrl.u32 %v414, 7
        %v416 = vsub.s32 4, %v415
        %v417 = vrot.slane %v371, %v416
        %v418 = vlaneseq
        %v419 = vshrl.u32 %v418, 7
        %v420 = vsub.s32 0, %v419
        %v421 = vrot.slane %v413, %v420
        %v422 = vlaneseq
        %v423 = vshrl.u32 %v422, 7
        %v424 = vsub.s32 0, %v423
        %v425 = vrot.slane %v417, %v424
        %vm426 = vcmp.eq.s32.totalorder %v374, %v421
        %vm427 = vcmp.eq.s32.totalorder %v374, %v425
        %vm428 = vcmp.eq.s32.totalorder %v375, %v421
        %vm429 = vcmp.eq.s32.totalorder %v375, %v425
        %vm430 = vcmp.eq.s32.totalorder %v376, %v421
        %vm431 = vcmp.eq.s32.totalorder %v376, %v425
        %vm432 = vcmp.eq.s32.totalorder %v377, %v421
        %vm433 = vcmp.eq.s32.totalorder %v377, %v425
        %vm434 = vcmp.eq.s32.totalorder %v378, %v421
        %vm435 = vcmp.eq.s32.totalorder %v378, %v425
        %vm436 = vcmp.eq.s32.totalorder %v379, %v421
        %vm437 = vcmp.eq.s32.totalorder %v379, %v425
        %vm438 = vcmp.eq.s32.totalorder %v380, %v421
        %vm439 = vcmp.eq.s32.totalorder %v380, %v425
        %vm440 = vcmp.eq.s32.totalorder %v381, %v421
        %vm441 = vcmp.eq.s32.totalorder %v381, %v425
        %vm442 = vcmp.eq.s32.totalorder %v382, %v421
        %vm443 = vcmp.eq.s32.totalorder %v382, %v425
        %vm444 = vcmp.eq.s32.totalorder %v383, %v421
        %vm445 = vcmp.eq.s32.totalorder %v383, %v425
        %vm446 = vcmp.eq.s32.totalorder %v384, %v421
        %vm447 = vcmp.eq.s32.totalorder %v384, %v425
        %vm448 = vcmp.eq.s32.totalorder %v385, %v421
        %vm449 = vcmp.eq.s32.totalorder %v385, %v425
        %vm450 = vcmp.eq.s32.totalorder %v386, %v421
        %vm451 = vcmp.eq.s32.totalorder %v386, %v425
        %vm452 = vcmp.eq.s32.totalorder %v387, %v421
        %vm453 = vcmp.eq.s32.totalorder %v387, %v425
        %vm454 = vcmp.eq.s32.totalorder %v388, %v421
        %vm455 = vcmp.eq.s32.totalorder %v388, %v425
        %vm456 = vcmp.eq.s32.totalorder %v389, %v421
        %vm457 = vcmp.eq.s32.totalorder %v389, %v425
        %vm458 = vcmp.eq.s32.totalorder %v390, %v421
        %vm459 = vcmp.eq.s32.totalorder %v390, %v425
        %vm460 = vcmp.eq.s32.totalorder %v391, %v421
        %vm461 = vcmp.eq.s32.totalorder %v391, %v425
        %vm462 = vcmp.eq.s32.totalorder %v392, %v421
        %vm463 = vcmp.eq.s32.totalorder %v392, %v425
        %vm464 = vcmp.eq.s32.totalorder %v393, %v421
        %vm465 = vcmp.eq.s32.totalorder %v393, %v425
        %vm466 = vcmp.eq.s32.totalorder %v394, %v421
        %vm467 = vcmp.eq.s32.totalorder %v394, %v425
        %vm468 = vcmp.eq.s32.totalorder %v395, %v421
        %vm469 = vcmp.eq.s32.totalorder %v395, %v425
        %vm470 = vcmp.eq.s32.totalorder %v396, %v421
        %vm471 = vcmp.eq.s32.totalorder %v396, %v425
        %vm472 = vcmp.eq.s32.totalorder %v397, %v421
        %vm473 = vcmp.eq.s32.totalorder %v397, %v425
        %vm474 = vcmp.eq.s32.totalorder %v398, %v421
        %vm475 = vcmp.eq.s32.totalorder %v398, %v425
        %vm476 = vcmp.eq.s32.totalorder %v399, %v421
        %vm477 = vcmp.eq.s32.totalorder %v399, %v425
        %vm478 = vcmp.eq.s32.totalorder %v400, %v421
        %vm479 = vcmp.eq.s32.totalorder %v400, %v425
        %vm480 = vcmp.eq.s32.totalorder %v401, %v421
        %vm481 = vcmp.eq.s32.totalorder %v401, %v425
        %vm482 = vcmp.eq.s32.totalorder %v402, %v421
        %vm483 = vcmp.eq.s32.totalorder %v402, %v425
        %vm484 = vcmp.eq.s32.totalorder %v403, %v421
        %vm485 = vcmp.eq.s32.totalorder %v403, %v425
        %vm486 = vcmp.eq.s32.totalorder %v404, %v421
        %vm487 = vcmp.eq.s32.totalorder %v404, %v425
        %vm488 = vcmp.eq.s32.totalorder %v405, %v421
        %vm489 = vcmp.eq.s32.totalorder %v405, %v425
        %v490 = vsel %vm426, 1, 0
        %v491 = vsel %vm427, 1, 0
        %v492 = vsel %vm428, 1, 0
        %v493 = vsel %vm429, 1, 0
        %v494 = vsel %vm430, 1, 0
        %v495 = vsel %vm431, 1, 0
        %v496 = vsel %vm432, 1, 0
        %v497 = vsel %vm433, 1, 0
        %v498 = vsel %vm434, 1, 0
        %v499 = vsel %vm435, 1, 0
        %v500 = vsel %vm436, 1, 0
        %v501 = vsel %vm437, 1, 0
        %v502 = vsel %vm438, 1, 0
        %v503 = vsel %vm439, 1, 0
        %v504 = vsel %vm440, 1, 0
        %v505 = vsel %vm441, 1, 0
        %v506 = vsel %vm442, 1, 0
        %v507 = vsel %vm443, 1, 0
        %v508 = vsel %vm444, 1, 0
        %v509 = vsel %vm445, 1, 0
        %v510 = vsel %vm446, 1, 0
        %v511 = vsel %vm447, 1, 0
        %v512 = vsel %vm448, 1, 0
        %v513 = vsel %vm449, 1, 0
        %v514 = vsel %vm450, 1, 0
        %v515 = vsel %vm451, 1, 0
        %v516 = vsel %vm452, 1, 0
        %v517 = vsel %vm453, 1, 0
        %v518 = vsel %vm454, 1, 0
        %v519 = vsel %vm455, 1, 0
        %v520 = vsel %vm456, 1, 0
        %v521 = vsel %vm457, 1, 0
        %v522 = vsel %vm458, 1, 0
        %v523 = vsel %vm459, 1, 0
        %v524 = vsel %vm460, 1, 0
        %v525 = vsel %vm461, 1, 0
        %v526 = vsel %vm462, 1, 0
        %v527 = vsel %vm463, 1, 0
        %v528 = vsel %vm464, 1, 0
        %v529 = vsel %vm465, 1, 0
        %v530 = vsel %vm466, 1, 0
        %v531 = vsel %vm467, 1, 0
        %v532 = vsel %vm468, 1, 0
        %v533 = vsel %vm469, 1, 0
        %v534 = vsel %vm470, 1, 0
        %v535 = vsel %vm471, 1, 0
        %v536 = vsel %vm472, 1, 0
        %v537 = vsel %vm473, 1, 0
        %v538 = vsel %vm474, 1, 0
        %v539 = vsel %vm475, 1, 0
        %v540 = vsel %vm476, 1, 0
        %v541 = vsel %vm477, 1, 0
        %v542 = vsel %vm478, 1, 0
        %v543 = vsel %vm479, 1, 0
        %v544 = vsel %vm480, 1, 0
        %v545 = vsel %vm481, 1, 0
        %v546 = vsel %vm482, 1, 0
        %v547 = vsel %vm483, 1, 0
        %v548 = vsel %vm484, 1, 0
        %v549 = vsel %vm485, 1, 0
        %v550 = vsel %vm486, 1, 0
        %v551 = vsel %vm487, 1, 0
        %v552 = vsel %vm488, 1, 0
        %v553 = vsel %vm489, 1, 0
        %v554 = vcvt.s32.f32 %v490
        %v555 = vcvt.s32.f32 %v491
        %v556 = vcvt.s32.f32 %v492
        %v557 = vcvt.s32.f32 %v493
        %v558 = vcvt.s32.f32 %v494
        %v559 = vcvt.s32.f32 %v495
        %v560 = vcvt.s32.f32 %v496
        %v561 = vcvt.s32.f32 %v497
        %v562 = vcvt.s32.f32 %v498
        %v563 = vcvt.s32.f32 %v499
        %v564 = vcvt.s32.f32 %v500
        %v565 = vcvt.s32.f32 %v501
        %v566 = vcvt.s32.f32 %v502
        %v567 = vcvt.s32.f32 %v503
        %v568 = vcvt.s32.f32 %v504
        %v569 = vcvt.s32.f32 %v505
        %v570 = vcvt.s32.f32 %v506
        %v571 = vcvt.s32.f32 %v507
        %v572 = vcvt.s32.f32 %v508
        %v573 = vcvt.s32.f32 %v509
        %v574 = vcvt.s32.f32 %v510
        %v575 = vcvt.s32.f32 %v511
        %v576 = vcvt.s32.f32 %v512
        %v577 = vcvt.s32.f32 %v513
        %v578 = vcvt.s32.f32 %v514
        %v579 = vcvt.s32.f32 %v515
        %v580 = vcvt.s32.f32 %v516
        %v581 = vcvt.s32.f32 %v517
        %v582 = vcvt.s32.f32 %v518
        %v583 = vcvt.s32.f32 %v519
        %v584 = vcvt.s32.f32 %v520
        %v585 = vcvt.s32.f32 %v521
        %v586 = vcvt.s32.f32 %v522
        %v587 = vcvt.s32.f32 %v523
        %v588 = vcvt.s32.f32 %v524
        %v589 = vcvt.s32.f32 %v525
        %v590 = vcvt.s32.f32 %v526
        %v591 = vcvt.s32.f32 %v527
        %v592 = vcvt.s32.f32 %v528
        %v593 = vcvt.s32.f32 %v529
        %v594 = vcvt.s32.f32 %v530
        %v595 = vcvt.s32.f32 %v531
        %v596 = vcvt.s32.f32 %v532
        %v597 = vcvt.s32.f32 %v533
        %v598 = vcvt.s32.f32 %v534
        %v599 = vcvt.s32.f32 %v535
        %v600 = vcvt.s32.f32 %v536
        %v601 = vcvt.s32.f32 %v537
        %v602 = vcvt.s32.f32 %v538
        %v603 = vcvt.s32.f32 %v539
        %v604 = vcvt.s32.f32 %v540
        %v605 = vcvt.s32.f32 %v541
        %v606 = vcvt.s32.f32 %v542
        %v607 = vcvt.s32.f32 %v543
        %v608 = vcvt.s32.f32 %v544
        %v609 = vcvt.s32.f32 %v545
        %v610 = vcvt.s32.f32 %v546
        %v611 = vcvt.s32.f32 %v547
        %v612 = vcvt.s32.f32 %v548
        %v613 = vcvt.s32.f32 %v549
        %v614 = vcvt.s32.f32 %v550
        %v615 = vcvt.s32.f32 %v551
        %v616 = vcvt.s32.f32 %v552
        %v617 = vcvt.s32.f32 %v553
        %v618 = vpack.c.bf16 %v556, %v554
        %v619 = vpack.c.bf16 %v557, %v555
        %v620 = vpack.c.bf16 %v560, %v558
        %v621 = vpack.c.bf16 %v561, %v559
        %v622 = vpack.c.bf16 %v564, %v562
        %v623 = vpack.c.bf16 %v565, %v563
        %v624 = vpack.c.bf16 %v568, %v566
        %v625 = vpack.c.bf16 %v569, %v567
        %v626 = vpack.c.bf16 %v572, %v570
        %v627 = vpack.c.bf16 %v573, %v571
        %v628 = vpack.c.bf16 %v576, %v574
        %v629 = vpack.c.bf16 %v577, %v575
        %v630 = vpack.c.bf16 %v580, %v578
        %v631 = vpack.c.bf16 %v581, %v579
        %v632 = vpack.c.bf16 %v584, %v582
        %v633 = vpack.c.bf16 %v585, %v583
        %v634 = vpack.c.bf16 %v588, %v586
        %v635 = vpack.c.bf16 %v589, %v587
        %v636 = vpack.c.bf16 %v592, %v590
        %v637 = vpack.c.bf16 %v593, %v591
        %v638 = vpack.c.bf16 %v596, %v594
        %v639 = vpack.c.bf16 %v597, %v595
        %v640 = vpack.c.bf16 %v600, %v598
        %v641 = vpack.c.bf16 %v601, %v599
        %v642 = vpack.c.bf16 %v604, %v602
        %v643 = vpack.c.bf16 %v605, %v603
        %v644 = vpack.c.bf16 %v608, %v606
        %v645 = vpack.c.bf16 %v609, %v607
        %v646 = vpack.c.bf16 %v612, %v610
        %v647 = vpack.c.bf16 %v613, %v611
        %v648 = vpack.c.bf16 %v616, %v614
        %v649 = vpack.c.bf16 %v617, %v615
        %650 = vmatprep.subr.bf16.mxu0 %v619
        %651 = vmatpush1.bf16.msra.mxu0 %v618
        %652 = vmatprep.subr.bf16.mxu0 %v621
        %653 = vmatpush1.bf16.msra.mxu0 %v620
        %654 = vmatprep.subr.bf16.mxu0 %v623
        %655 = vmatpush1.bf16.msra.mxu0 %v622
        %656 = vmatprep.subr.bf16.mxu0 %v625
        %657 = vmatpush1.bf16.msra.mxu0 %v624
        %658 = vmatprep.subr.bf16.mxu0 %v627
        %659 = vmatpush1.bf16.msra.mxu0 %v626
        %660 = vmatprep.subr.bf16.mxu0 %v629
        %661 = vmatpush1.bf16.msra.mxu0 %v628
        %662 = vmatprep.subr.bf16.mxu0 %v631
        %663 = vmatpush1.bf16.msra.mxu0 %v630
        %664 = vmatprep.subr.bf16.mxu0 %v633
        %665 = vmatpush1.bf16.msra.mxu0 %v632
        %666 = vmatprep.subr.bf16.mxu0 %v635
        %667 = vmatpush1.bf16.msra.mxu0 %v634
        %668 = vmatprep.subr.bf16.mxu0 %v637
        %669 = vmatpush1.bf16.msra.mxu0 %v636
        %670 = vmatprep.subr.bf16.mxu0 %v639
        %671 = vmatpush1.bf16.msra.mxu0 %v638
        %672 = vmatprep.subr.bf16.mxu0 %v641
        %673 = vmatpush1.bf16.msra.mxu0 %v640
        %674 = vmatprep.subr.bf16.mxu0 %v643
        %675 = vmatpush1.bf16.msra.mxu0 %v642
        %676 = vmatprep.subr.bf16.mxu0 %v645
        %677 = vmatpush1.bf16.msra.mxu0 %v644
        %678 = vmatprep.subr.bf16.mxu0 %v647
        %679 = vmatpush1.bf16.msra.mxu0 %v646
        %680 = vmatprep.subr.bf16.mxu0 %v649
        %681 = vmatpush1.bf16.msra.mxu0 %v648
        %682 = vmatprep.mubr.bf16.mxu0 %v407
        %683 = vmatmul.mubr.bf16.gmra.mrb[0].mxu0 %v406
        %v684 = vpop.f32.mrb[0].mxu0
        %v685 = vadd.f32 0.0, %v684
        %v686 = vpop.f32.mrb[0].mxu0
        %v687 = vadd.f32 0.0, %v686
        %v688 = vpop.f32.mrb[0].mxu0
        %v689 = vadd.f32 0.0, %v688
        %v690 = vpop.f32.mrb[0].mxu0
        %v691 = vadd.f32 0.0, %v690
        %692 = vmatprep.mubr.bf16.mxu0 %v409
        %693 = vmatmul.mubr.bf16.gmra.mrb[0].mxu0 %v408
        %v694 = vpop.f32.mrb[0].mxu0
        %v695 = vadd.f32 0.0, %v694
        %v696 = vpop.f32.mrb[0].mxu0
        %v697 = vadd.f32 0.0, %v696
        %v698 = vpop.f32.mrb[0].mxu0
        %v699 = vadd.f32 0.0, %v698
        %v700 = vpop.f32.mrb[0].mxu0
        %v701 = vadd.f32 0.0, %v700
        %702 = vdwg.mxu0
        %v703 = vmul.f32 %v355, %v685
        %v704 = vmul.f32 %v356, %v687
        %v705 = vmul.f32 %v357, %v689
        %v706 = vmul.f32 %v358, %v691
        %v707 = vmul.f32 %v359, %v695
        %v708 = vmul.f32 %v360, %v697
        %v709 = vmul.f32 %v361, %v699
        %v710 = vmul.f32 %v362, %v701
        %v711 = vadd.f32 %v703, %v705
        %v712 = vadd.f32 %v711, %v707
        %v713 = vadd.f32 %v712, %v709
        %v714 = vrot.slane %v713, 4
        %v715 = vadd.f32 %v713, %v714
        %v716 = vrot.slane %v715, 2
        %v717 = vadd.f32 %v715, %v716
        %v718 = vrot.slane %v717, 1
        %v719 = vadd.f32 %v717, %v718
        %v720 = vadd.f32 %v704, %v706
        %v721 = vadd.f32 %v720, %v708
        %v722 = vadd.f32 %v721, %v710
        %v723 = vrot.slane %v722, 4
        %v724 = vadd.f32 %v722, %v723
        %v725 = vrot.slane %v724, 2
        %v726 = vadd.f32 %v724, %v725
        %v727 = vrot.slane %v726, 1
        %v728 = vadd.f32 %v726, %v727
        %v729 = vstv %s372
        %v730 = vmul.f32 %v719, %v729
        %v731 = vmul.f32 %v728, %v729
        %v732 = vlaneseq
        %v733 = vshrl.u32 %v732, 7
        %v734 = vsub.s32 1, %v733
        %v735 = vrot.slane %v371, %v734
        %v736 = vlaneseq
        %v737 = vshrl.u32 %v736, 7
        %v738 = vsub.s32 5, %v737
        %v739 = vrot.slane %v371, %v738
        %v740 = vlaneseq
        %v741 = vshrl.u32 %v740, 7
        %v742 = vsub.s32 1, %v741
        %v743 = vrot.slane %v735, %v742
        %v744 = vlaneseq
        %v745 = vshrl.u32 %v744, 7
        %v746 = vsub.s32 1, %v745
        %v747 = vrot.slane %v739, %v746
        %vm748 = vcmp.eq.s32.totalorder %v374, %v743
        %vm749 = vcmp.eq.s32.totalorder %v374, %v747
        %vm750 = vcmp.eq.s32.totalorder %v375, %v743
        %vm751 = vcmp.eq.s32.totalorder %v375, %v747
        %vm752 = vcmp.eq.s32.totalorder %v376, %v743
        %vm753 = vcmp.eq.s32.totalorder %v376, %v747
        %vm754 = vcmp.eq.s32.totalorder %v377, %v743
        %vm755 = vcmp.eq.s32.totalorder %v377, %v747
        %vm756 = vcmp.eq.s32.totalorder %v378, %v743
        %vm757 = vcmp.eq.s32.totalorder %v378, %v747
        %vm758 = vcmp.eq.s32.totalorder %v379, %v743
        %vm759 = vcmp.eq.s32.totalorder %v379, %v747
        %vm760 = vcmp.eq.s32.totalorder %v380, %v743
        %vm761 = vcmp.eq.s32.totalorder %v380, %v747
        %vm762 = vcmp.eq.s32.totalorder %v381, %v743
        %vm763 = vcmp.eq.s32.totalorder %v381, %v747
        %vm764 = vcmp.eq.s32.totalorder %v382, %v743
        %vm765 = vcmp.eq.s32.totalorder %v382, %v747
        %vm766 = vcmp.eq.s32.totalorder %v383, %v743
        %vm767 = vcmp.eq.s32.totalorder %v383, %v747
        %vm768 = vcmp.eq.s32.totalorder %v384, %v743
        %vm769 = vcmp.eq.s32.totalorder %v384, %v747
        %vm770 = vcmp.eq.s32.totalorder %v385, %v743
        %vm771 = vcmp.eq.s32.totalorder %v385, %v747
        %vm772 = vcmp.eq.s32.totalorder %v386, %v743
        %vm773 = vcmp.eq.s32.totalorder %v386, %v747
        %vm774 = vcmp.eq.s32.totalorder %v387, %v743
        %vm775 = vcmp.eq.s32.totalorder %v387, %v747
        %vm776 = vcmp.eq.s32.totalorder %v388, %v743
        %vm777 = vcmp.eq.s32.totalorder %v388, %v747
        %vm778 = vcmp.eq.s32.totalorder %v389, %v743
        %vm779 = vcmp.eq.s32.totalorder %v389, %v747
        %vm780 = vcmp.eq.s32.totalorder %v390, %v743
        %vm781 = vcmp.eq.s32.totalorder %v390, %v747
        %vm782 = vcmp.eq.s32.totalorder %v391, %v743
        %vm783 = vcmp.eq.s32.totalorder %v391, %v747
        %vm784 = vcmp.eq.s32.totalorder %v392, %v743
        %vm785 = vcmp.eq.s32.totalorder %v392, %v747
        %vm786 = vcmp.eq.s32.totalorder %v393, %v743
        %vm787 = vcmp.eq.s32.totalorder %v393, %v747
        %vm788 = vcmp.eq.s32.totalorder %v394, %v743
        %vm789 = vcmp.eq.s32.totalorder %v394, %v747
        %vm790 = vcmp.eq.s32.totalorder %v395, %v743
        %vm791 = vcmp.eq.s32.totalorder %v395, %v747
        %vm792 = vcmp.eq.s32.totalorder %v396, %v743
        %vm793 = vcmp.eq.s32.totalorder %v396, %v747
        %vm794 = vcmp.eq.s32.totalorder %v397, %v743
        %vm795 = vcmp.eq.s32.totalorder %v397, %v747
        %vm796 = vcmp.eq.s32.totalorder %v398, %v743
        %vm797 = vcmp.eq.s32.totalorder %v398, %v747
        %vm798 = vcmp.eq.s32.totalorder %v399, %v743
        %vm799 = vcmp.eq.s32.totalorder %v399, %v747
        %vm800 = vcmp.eq.s32.totalorder %v400, %v743
        %vm801 = vcmp.eq.s32.totalorder %v400, %v747
        %vm802 = vcmp.eq.s32.totalorder %v401, %v743
        %vm803 = vcmp.eq.s32.totalorder %v401, %v747
        %vm804 = vcmp.eq.s32.totalorder %v402, %v743
        %vm805 = vcmp.eq.s32.totalorder %v402, %v747
        %vm806 = vcmp.eq.s32.totalorder %v403, %v743
        %vm807 = vcmp.eq.s32.totalorder %v403, %v747
        %vm808 = vcmp.eq.s32.totalorder %v404, %v743
        %vm809 = vcmp.eq.s32.totalorder %v404, %v747
        %vm810 = vcmp.eq.s32.totalorder %v405, %v743
        %vm811 = vcmp.eq.s32.totalorder %v405, %v747
        %v812 = vsel %vm748, 1, 0
        %v813 = vsel %vm749, 1, 0
        %v814 = vsel %vm750, 1, 0
        %v815 = vsel %vm751, 1, 0
        %v816 = vsel %vm752, 1, 0
        %v817 = vsel %vm753, 1, 0
        %v818 = vsel %vm754, 1, 0
        %v819 = vsel %vm755, 1, 0
        %v820 = vsel %vm756, 1, 0
        %v821 = vsel %vm757, 1, 0
        %v822 = vsel %vm758, 1, 0
        %v823 = vsel %vm759, 1, 0
        %v824 = vsel %vm760, 1, 0
        %v825 = vsel %vm761, 1, 0
        %v826 = vsel %vm762, 1, 0
        %v827 = vsel %vm763, 1, 0
        %v828 = vsel %vm764, 1, 0
        %v829 = vsel %vm765, 1, 0
        %v830 = vsel %vm766, 1, 0
        %v831 = vsel %vm767, 1, 0
        %v832 = vsel %vm768, 1, 0
        %v833 = vsel %vm769, 1, 0
        %v834 = vsel %vm770, 1, 0
        %v835 = vsel %vm771, 1, 0
        %v836 = vsel %vm772, 1, 0
        %v837 = vsel %vm773, 1, 0
        %v838 = vsel %vm774, 1, 0
        %v839 = vsel %vm775, 1, 0
        %v840 = vsel %vm776, 1, 0
        %v841 = vsel %vm777, 1, 0
        %v842 = vsel %vm778, 1, 0
        %v843 = vsel %vm779, 1, 0
        %v844 = vsel %vm780, 1, 0
        %v845 = vsel %vm781, 1, 0
        %v846 = vsel %vm782, 1, 0
        %v847 = vsel %vm783, 1, 0
        %v848 = vsel %vm784, 1, 0
        %v849 = vsel %vm785, 1, 0
        %v850 = vsel %vm786, 1, 0
        %v851 = vsel %vm787, 1, 0
        %v852 = vsel %vm788, 1, 0
        %v853 = vsel %vm789, 1, 0
        %v854 = vsel %vm790, 1, 0
        %v855 = vsel %vm791, 1, 0
        %v856 = vsel %vm792, 1, 0
        %v857 = vsel %vm793, 1, 0
        %v858 = vsel %vm794, 1, 0
        %v859 = vsel %vm795, 1, 0
        %v860 = vsel %vm796, 1, 0
        %v861 = vsel %vm797, 1, 0
        %v862 = vsel %vm798, 1, 0
        %v863 = vsel %vm799, 1, 0
        %v864 = vsel %vm800, 1, 0
        %v865 = vsel %vm801, 1, 0
        %v866 = vsel %vm802, 1, 0
        %v867 = vsel %vm803, 1, 0
        %v868 = vsel %vm804, 1, 0
        %v869 = vsel %vm805, 1, 0
        %v870 = vsel %vm806, 1, 0
        %v871 = vsel %vm807, 1, 0
        %v872 = vsel %vm808, 1, 0
        %v873 = vsel %vm809, 1, 0
        %v874 = vsel %vm810, 1, 0
        %v875 = vsel %vm811, 1, 0
        %v876 = vcvt.s32.f32 %v812
        %v877 = vcvt.s32.f32 %v813
        %v878 = vcvt.s32.f32 %v814
        %v879 = vcvt.s32.f32 %v815
        %v880 = vcvt.s32.f32 %v816
        %v881 = vcvt.s32.f32 %v817
        %v882 = vcvt.s32.f32 %v818
        %v883 = vcvt.s32.f32 %v819
        %v884 = vcvt.s32.f32 %v820
        %v885 = vcvt.s32.f32 %v821
        %v886 = vcvt.s32.f32 %v822
        %v887 = vcvt.s32.f32 %v823
        %v888 = vcvt.s32.f32 %v824
        %v889 = vcvt.s32.f32 %v825
        %v890 = vcvt.s32.f32 %v826
        %v891 = vcvt.s32.f32 %v827
        %v892 = vcvt.s32.f32 %v828
        %v893 = vcvt.s32.f32 %v829
        %v894 = vcvt.s32.f32 %v830
        %v895 = vcvt.s32.f32 %v831
        %v896 = vcvt.s32.f32 %v832
        %v897 = vcvt.s32.f32 %v833
        %v898 = vcvt.s32.f32 %v834
        %v899 = vcvt.s32.f32 %v835
        %v900 = vcvt.s32.f32 %v836
        %v901 = vcvt.s32.f32 %v837
        %v902 = vcvt.s32.f32 %v838
        %v903 = vcvt.s32.f32 %v839
        %v904 = vcvt.s32.f32 %v840
        %v905 = vcvt.s32.f32 %v841
        %v906 = vcvt.s32.f32 %v842
        %v907 = vcvt.s32.f32 %v843
        %v908 = vcvt.s32.f32 %v844
        %v909 = vcvt.s32.f32 %v845
        %v910 = vcvt.s32.f32 %v846
        %v911 = vcvt.s32.f32 %v847
        %v912 = vcvt.s32.f32 %v848
        %v913 = vcvt.s32.f32 %v849
        %v914 = vcvt.s32.f32 %v850
        %v915 = vcvt.s32.f32 %v851
        %v916 = vcvt.s32.f32 %v852
        %v917 = vcvt.s32.f32 %v853
        %v918 = vcvt.s32.f32 %v854
        %v919 = vcvt.s32.f32 %v855
        %v920 = vcvt.s32.f32 %v856
        %v921 = vcvt.s32.f32 %v857
        %v922 = vcvt.s32.f32 %v858
        %v923 = vcvt.s32.f32 %v859
        %v924 = vcvt.s32.f32 %v860
        %v925 = vcvt.s32.f32 %v861
        %v926 = vcvt.s32.f32 %v862
        %v927 = vcvt.s32.f32 %v863
        %v928 = vcvt.s32.f32 %v864
        %v929 = vcvt.s32.f32 %v865
        %v930 = vcvt.s32.f32 %v866
        %v931 = vcvt.s32.f32 %v867
        %v932 = vcvt.s32.f32 %v868
        %v933 = vcvt.s32.f32 %v869
        %v934 = vcvt.s32.f32 %v870
        %v935 = vcvt.s32.f32 %v871
        %v936 = vcvt.s32.f32 %v872
        %v937 = vcvt.s32.f32 %v873
        %v938 = vcvt.s32.f32 %v874
        %v939 = vcvt.s32.f32 %v875
        %v940 = vpack.c.bf16 %v878, %v876
        %v941 = vpack.c.bf16 %v879, %v877
        %v942 = vpack.c.bf16 %v882, %v880
        %v943 = vpack.c.bf16 %v883, %v881
        %v944 = vpack.c.bf16 %v886, %v884
        %v945 = vpack.c.bf16 %v887, %v885
        %v946 = vpack.c.bf16 %v890, %v888
        %v947 = vpack.c.bf16 %v891, %v889
        %v948 = vpack.c.bf16 %v894, %v892
        %v949 = vpack.c.bf16 %v895, %v893
        %v950 = vpack.c.bf16 %v898, %v896
        %v951 = vpack.c.bf16 %v899, %v897
        %v952 = vpack.c.bf16 %v902, %v900
        %v953 = vpack.c.bf16 %v903, %v901
        %v954 = vpack.c.bf16 %v906, %v904
        %v955 = vpack.c.bf16 %v907, %v905
        %v956 = vpack.c.bf16 %v910, %v908
        %v957 = vpack.c.bf16 %v911, %v909
        %v958 = vpack.c.bf16 %v914, %v912
        %v959 = vpack.c.bf16 %v915, %v913
        %v960 = vpack.c.bf16 %v918, %v916
        %v961 = vpack.c.bf16 %v919, %v917
        %v962 = vpack.c.bf16 %v922, %v920
        %v963 = vpack.c.bf16 %v923, %v921
        %v964 = vpack.c.bf16 %v926, %v924
        %v965 = vpack.c.bf16 %v927, %v925
        %v966 = vpack.c.bf16 %v930, %v928
        %v967 = vpack.c.bf16 %v931, %v929
        %v968 = vpack.c.bf16 %v934, %v932
        %v969 = vpack.c.bf16 %v935, %v933
        %v970 = vpack.c.bf16 %v938, %v936
        %v971 = vpack.c.bf16 %v939, %v937
        %972 = vmatprep.subr.bf16.mxu0 %v941
        %973 = vmatpush1.bf16.msra.mxu0 %v940
        %974 = vmatprep.subr.bf16.mxu0 %v943
        %975 = vmatpush1.bf16.msra.mxu0 %v942
        %976 = vmatprep.subr.bf16.mxu0 %v945
        %977 = vmatpush1.bf16.msra.mxu0 %v944
        %978 = vmatprep.subr.bf16.mxu0 %v947
        %979 = vmatpush1.bf16.msra.mxu0 %v946
        %980 = vmatprep.subr.bf16.mxu0 %v949
        %981 = vmatpush1.bf16.msra.mxu0 %v948
        %982 = vmatprep.subr.bf16.mxu0 %v951
        %983 = vmatpush1.bf16.msra.mxu0 %v950
        %984 = vmatprep.subr.bf16.mxu0 %v953
        %985 = vmatpush1.bf16.msra.mxu0 %v952
        %986 = vmatprep.subr.bf16.mxu0 %v955
        %987 = vmatpush1.bf16.msra.mxu0 %v954
        %988 = vmatprep.subr.bf16.mxu0 %v957
        %989 = vmatpush1.bf16.msra.mxu0 %v956
        %990 = vmatprep.subr.bf16.mxu0 %v959
        %991 = vmatpush1.bf16.msra.mxu0 %v958
        %992 = vmatprep.subr.bf16.mxu0 %v961
        %993 = vmatpush1.bf16.msra.mxu0 %v960
        %994 = vmatprep.subr.bf16.mxu0 %v963
        %995 = vmatpush1.bf16.msra.mxu0 %v962
        %996 = vmatprep.subr.bf16.mxu0 %v965
        %997 = vmatpush1.bf16.msra.mxu0 %v964
        %998 = vmatprep.subr.bf16.mxu0 %v967
        %999 = vmatpush1.bf16.msra.mxu0 %v966
        %1000 = vmatprep.subr.bf16.mxu0 %v969
        %1001 = vmatpush1.bf16.msra.mxu0 %v968
        %1002 = vmatprep.subr.bf16.mxu0 %v971
        %1003 = vmatpush1.bf16.msra.mxu0 %v970
        %1004 = vmatprep.mubr.bf16.mxu0 %v407
        %1005 = vmatmul.mubr.bf16.gmra.mrb[0].mxu0 %v406
        %v1006 = vpop.f32.mrb[0].mxu0
        %v1007 = vadd.f32 0.0, %v1006
        %v1008 = vpop.f32.mrb[0].mxu0
        %v1009 = vadd.f32 0.0, %v1008
        %v1010 = vpop.f32.mrb[0].mxu0
        %v1011 = vadd.f32 0.0, %v1010
        %v1012 = vpop.f32.mrb[0].mxu0
        %v1013 = vadd.f32 0.0, %v1012
        %1014 = vmatprep.mubr.bf16.mxu0 %v409
        %1015 = vmatmul.mubr.bf16.gmra.mrb[0].mxu0 %v408
        %v1016 = vpop.f32.mrb[0].mxu0
        %v1017 = vadd.f32 0.0, %v1016
        %v1018 = vpop.f32.mrb[0].mxu0
        %v1019 = vadd.f32 0.0, %v1018
        %v1020 = vpop.f32.mrb[0].mxu0
        %v1021 = vadd.f32 0.0, %v1020
        %v1022 = vpop.f32.mrb[0].mxu0
        %v1023 = vadd.f32 0.0, %v1022
        %1024 = vdwg.mxu0
        %v1025 = vmul.f32 %v355, %v1007
        %v1026 = vmul.f32 %v356, %v1009
        %v1027 = vmul.f32 %v357, %v1011
        %v1028 = vmul.f32 %v358, %v1013
        %v1029 = vmul.f32 %v359, %v1017
        %v1030 = vmul.f32 %v360, %v1019
        %v1031 = vmul.f32 %v361, %v1021
        %v1032 = vmul.f32 %v362, %v1023
        %v1033 = vadd.f32 %v1025, %v1027
        %v1034 = vadd.f32 %v1033, %v1029
        %v1035 = vadd.f32 %v1034, %v1031
        %v1036 = vrot.slane %v1035, 4
        %v1037 = vadd.f32 %v1035, %v1036
        %v1038 = vrot.slane %v1037, 2
        %v1039 = vadd.f32 %v1037, %v1038
        %v1040 = vrot.slane %v1039, 1
        %v1041 = vadd.f32 %v1039, %v1040
        %v1042 = vadd.f32 %v1026, %v1028
        %v1043 = vadd.f32 %v1042, %v1030
        %v1044 = vadd.f32 %v1043, %v1032
        %v1045 = vrot.slane %v1044, 4
        %v1046 = vadd.f32 %v1044, %v1045
        %v1047 = vrot.slane %v1046, 2
        %v1048 = vadd.f32 %v1046, %v1047
        %v1049 = vrot.slane %v1048, 1
        %v1050 = vadd.f32 %v1048, %v1049
        %v1051 = vmul.f32 %v1041, %v729
        %v1052 = vmul.f32 %v1050, %v729
        %v1053 = vlaneseq
        %v1054 = vshrl.u32 %v1053, 7
        %v1055 = vsub.s32 2, %v1054
        %v1056 = vrot.slane %v371, %v1055
        %v1057 = vlaneseq
        %v1058 = vshrl.u32 %v1057, 7
        %v1059 = vsub.s32 6, %v1058
        %v1060 = vrot.slane %v371, %v1059
        %v1061 = vlaneseq
        %v1062 = vshrl.u32 %v1061, 7
        %v1063 = vsub.s32 2, %v1062
        %v1064 = vrot.slane %v1056, %v1063
        %v1065 = vlaneseq
        %v1066 = vshrl.u32 %v1065, 7
        %v1067 = vsub.s32 2, %v1066
        %v1068 = vrot.slane %v1060, %v1067
        %vm1069 = vcmp.eq.s32.totalorder %v374, %v1064
        %vm1070 = vcmp.eq.s32.totalorder %v374, %v1068
        %vm1071 = vcmp.eq.s32.totalorder %v375, %v1064
        %vm1072 = vcmp.eq.s32.totalorder %v375, %v1068
        %vm1073 = vcmp.eq.s32.totalorder %v376, %v1064
        %vm1074 = vcmp.eq.s32.totalorder %v376, %v1068
        %vm1075 = vcmp.eq.s32.totalorder %v377, %v1064
        %vm1076 = vcmp.eq.s32.totalorder %v377, %v1068
        %vm1077 = vcmp.eq.s32.totalorder %v378, %v1064
        %vm1078 = vcmp.eq.s32.totalorder %v378, %v1068
        %vm1079 = vcmp.eq.s32.totalorder %v379, %v1064
        %vm1080 = vcmp.eq.s32.totalorder %v379, %v1068
        %vm1081 = vcmp.eq.s32.totalorder %v380, %v1064
        %vm1082 = vcmp.eq.s32.totalorder %v380, %v1068
        %vm1083 = vcmp.eq.s32.totalorder %v381, %v1064
        %vm1084 = vcmp.eq.s32.totalorder %v381, %v1068
        %vm1085 = vcmp.eq.s32.totalorder %v382, %v1064
        %vm1086 = vcmp.eq.s32.totalorder %v382, %v1068
        %vm1087 = vcmp.eq.s32.totalorder %v383, %v1064
        %vm1088 = vcmp.eq.s32.totalorder %v383, %v1068
        %vm1089 = vcmp.eq.s32.totalorder %v384, %v1064
        %vm1090 = vcmp.eq.s32.totalorder %v384, %v1068
        %vm1091 = vcmp.eq.s32.totalorder %v385, %v1064
        %vm1092 = vcmp.eq.s32.totalorder %v385, %v1068
        %vm1093 = vcmp.eq.s32.totalorder %v386, %v1064
        %vm1094 = vcmp.eq.s32.totalorder %v386, %v1068
        %vm1095 = vcmp.eq.s32.totalorder %v387, %v1064
        %vm1096 = vcmp.eq.s32.totalorder %v387, %v1068
        %vm1097 = vcmp.eq.s32.totalorder %v388, %v1064
        %vm1098 = vcmp.eq.s32.totalorder %v388, %v1068
        %vm1099 = vcmp.eq.s32.totalorder %v389, %v1064
        %vm1100 = vcmp.eq.s32.totalorder %v389, %v1068
        %vm1101 = vcmp.eq.s32.totalorder %v390, %v1064
        %vm1102 = vcmp.eq.s32.totalorder %v390, %v1068
        %vm1103 = vcmp.eq.s32.totalorder %v391, %v1064
        %vm1104 = vcmp.eq.s32.totalorder %v391, %v1068
        %vm1105 = vcmp.eq.s32.totalorder %v392, %v1064
        %vm1106 = vcmp.eq.s32.totalorder %v392, %v1068
        %vm1107 = vcmp.eq.s32.totalorder %v393, %v1064
        %vm1108 = vcmp.eq.s32.totalorder %v393, %v1068
        %vm1109 = vcmp.eq.s32.totalorder %v394, %v1064
        %vm1110 = vcmp.eq.s32.totalorder %v394, %v1068
        %vm1111 = vcmp.eq.s32.totalorder %v395, %v1064
        %vm1112 = vcmp.eq.s32.totalorder %v395, %v1068
        %vm1113 = vcmp.eq.s32.totalorder %v396, %v1064
        %vm1114 = vcmp.eq.s32.totalorder %v396, %v1068
        %vm1115 = vcmp.eq.s32.totalorder %v397, %v1064
        %vm1116 = vcmp.eq.s32.totalorder %v397, %v1068
        %vm1117 = vcmp.eq.s32.totalorder %v398, %v1064
        %vm1118 = vcmp.eq.s32.totalorder %v398, %v1068
        %vm1119 = vcmp.eq.s32.totalorder %v399, %v1064
        %vm1120 = vcmp.eq.s32.totalorder %v399, %v1068
        %vm1121 = vcmp.eq.s32.totalorder %v400, %v1064
        %vm1122 = vcmp.eq.s32.totalorder %v400, %v1068
        %vm1123 = vcmp.eq.s32.totalorder %v401, %v1064
        %vm1124 = vcmp.eq.s32.totalorder %v401, %v1068
        %vm1125 = vcmp.eq.s32.totalorder %v402, %v1064
        %vm1126 = vcmp.eq.s32.totalorder %v402, %v1068
        %vm1127 = vcmp.eq.s32.totalorder %v403, %v1064
        %vm1128 = vcmp.eq.s32.totalorder %v403, %v1068
        %vm1129 = vcmp.eq.s32.totalorder %v404, %v1064
        %vm1130 = vcmp.eq.s32.totalorder %v404, %v1068
        %vm1131 = vcmp.eq.s32.totalorder %v405, %v1064
        %vm1132 = vcmp.eq.s32.totalorder %v405, %v1068
        %v1133 = vsel %vm1069, 1, 0
        %v1134 = vsel %vm1070, 1, 0
        %v1135 = vsel %vm1071, 1, 0
        %v1136 = vsel %vm1072, 1, 0
        %v1137 = vsel %vm1073, 1, 0
        %v1138 = vsel %vm1074, 1, 0
        %v1139 = vsel %vm1075, 1, 0
        %v1140 = vsel %vm1076, 1, 0
        %v1141 = vsel %vm1077, 1, 0
        %v1142 = vsel %vm1078, 1, 0
        %v1143 = vsel %vm1079, 1, 0
        %v1144 = vsel %vm1080, 1, 0
        %v1145 = vsel %vm1081, 1, 0
        %v1146 = vsel %vm1082, 1, 0
        %v1147 = vsel %vm1083, 1, 0
        %v1148 = vsel %vm1084, 1, 0
        %v1149 = vsel %vm1085, 1, 0
        %v1150 = vsel %vm1086, 1, 0
        %v1151 = vsel %vm1087, 1, 0
        %v1152 = vsel %vm1088, 1, 0
        %v1153 = vsel %vm1089, 1, 0
        %v1154 = vsel %vm1090, 1, 0
        %v1155 = vsel %vm1091, 1, 0
        %v1156 = vsel %vm1092, 1, 0
        %v1157 = vsel %vm1093, 1, 0
        %v1158 = vsel %vm1094, 1, 0
        %v1159 = vsel %vm1095, 1, 0
        %v1160 = vsel %vm1096, 1, 0
        %v1161 = vsel %vm1097, 1, 0
        %v1162 = vsel %vm1098, 1, 0
        %v1163 = vsel %vm1099, 1, 0
        %v1164 = vsel %vm1100, 1, 0
        %v1165 = vsel %vm1101, 1, 0
        %v1166 = vsel %vm1102, 1, 0
        %v1167 = vsel %vm1103, 1, 0
        %v1168 = vsel %vm1104, 1, 0
        %v1169 = vsel %vm1105, 1, 0
        %v1170 = vsel %vm1106, 1, 0
        %v1171 = vsel %vm1107, 1, 0
        %v1172 = vsel %vm1108, 1, 0
        %v1173 = vsel %vm1109, 1, 0
        %v1174 = vsel %vm1110, 1, 0
        %v1175 = vsel %vm1111, 1, 0
        %v1176 = vsel %vm1112, 1, 0
        %v1177 = vsel %vm1113, 1, 0
        %v1178 = vsel %vm1114, 1, 0
        %v1179 = vsel %vm1115, 1, 0
        %v1180 = vsel %vm1116, 1, 0
        %v1181 = vsel %vm1117, 1, 0
        %v1182 = vsel %vm1118, 1, 0
        %v1183 = vsel %vm1119, 1, 0
        %v1184 = vsel %vm1120, 1, 0
        %v1185 = vsel %vm1121, 1, 0
        %v1186 = vsel %vm1122, 1, 0
        %v1187 = vsel %vm1123, 1, 0
        %v1188 = vsel %vm1124, 1, 0
        %v1189 = vsel %vm1125, 1, 0
        %v1190 = vsel %vm1126, 1, 0
        %v1191 = vsel %vm1127, 1, 0
        %v1192 = vsel %vm1128, 1, 0
        %v1193 = vsel %vm1129, 1, 0
        %v1194 = vsel %vm1130, 1, 0
        %v1195 = vsel %vm1131, 1, 0
        %v1196 = vsel %vm1132, 1, 0
        %v1197 = vcvt.s32.f32 %v1133
        %v1198 = vcvt.s32.f32 %v1134
        %v1199 = vcvt.s32.f32 %v1135
        %v1200 = vcvt.s32.f32 %v1136
        %v1201 = vcvt.s32.f32 %v1137
        %v1202 = vcvt.s32.f32 %v1138
        %v1203 = vcvt.s32.f32 %v1139
        %v1204 = vcvt.s32.f32 %v1140
        %v1205 = vcvt.s32.f32 %v1141
        %v1206 = vcvt.s32.f32 %v1142
        %v1207 = vcvt.s32.f32 %v1143
        %v1208 = vcvt.s32.f32 %v1144
        %v1209 = vcvt.s32.f32 %v1145
        %v1210 = vcvt.s32.f32 %v1146
        %v1211 = vcvt.s32.f32 %v1147
        %v1212 = vcvt.s32.f32 %v1148
        %v1213 = vcvt.s32.f32 %v1149
        %v1214 = vcvt.s32.f32 %v1150
        %v1215 = vcvt.s32.f32 %v1151
        %v1216 = vcvt.s32.f32 %v1152
        %v1217 = vcvt.s32.f32 %v1153
        %v1218 = vcvt.s32.f32 %v1154
        %v1219 = vcvt.s32.f32 %v1155
        %v1220 = vcvt.s32.f32 %v1156
        %v1221 = vcvt.s32.f32 %v1157
        %v1222 = vcvt.s32.f32 %v1158
        %v1223 = vcvt.s32.f32 %v1159
        %v1224 = vcvt.s32.f32 %v1160
        %v1225 = vcvt.s32.f32 %v1161
        %v1226 = vcvt.s32.f32 %v1162
        %v1227 = vcvt.s32.f32 %v1163
        %v1228 = vcvt.s32.f32 %v1164
        %v1229 = vcvt.s32.f32 %v1165
        %v1230 = vcvt.s32.f32 %v1166
        %v1231 = vcvt.s32.f32 %v1167
        %v1232 = vcvt.s32.f32 %v1168
        %v1233 = vcvt.s32.f32 %v1169
        %v1234 = vcvt.s32.f32 %v1170
        %v1235 = vcvt.s32.f32 %v1171
        %v1236 = vcvt.s32.f32 %v1172
        %v1237 = vcvt.s32.f32 %v1173
        %v1238 = vcvt.s32.f32 %v1174
        %v1239 = vcvt.s32.f32 %v1175
        %v1240 = vcvt.s32.f32 %v1176
        %v1241 = vcvt.s32.f32 %v1177
        %v1242 = vcvt.s32.f32 %v1178
        %v1243 = vcvt.s32.f32 %v1179
        %v1244 = vcvt.s32.f32 %v1180
        %v1245 = vcvt.s32.f32 %v1181
        %v1246 = vcvt.s32.f32 %v1182
        %v1247 = vcvt.s32.f32 %v1183
        %v1248 = vcvt.s32.f32 %v1184
        %v1249 = vcvt.s32.f32 %v1185
        %v1250 = vcvt.s32.f32 %v1186
        %v1251 = vcvt.s32.f32 %v1187
        %v1252 = vcvt.s32.f32 %v1188
        %v1253 = vcvt.s32.f32 %v1189
        %v1254 = vcvt.s32.f32 %v1190
        %v1255 = vcvt.s32.f32 %v1191
        %v1256 = vcvt.s32.f32 %v1192
        %v1257 = vcvt.s32.f32 %v1193
        %v1258 = vcvt.s32.f32 %v1194
        %v1259 = vcvt.s32.f32 %v1195
        %v1260 = vcvt.s32.f32 %v1196
        %v1261 = vpack.c.bf16 %v1199, %v1197
        %v1262 = vpack.c.bf16 %v1200, %v1198
        %v1263 = vpack.c.bf16 %v1203, %v1201
        %v1264 = vpack.c.bf16 %v1204, %v1202
        %v1265 = vpack.c.bf16 %v1207, %v1205
        %v1266 = vpack.c.bf16 %v1208, %v1206
        %v1267 = vpack.c.bf16 %v1211, %v1209
        %v1268 = vpack.c.bf16 %v1212, %v1210
        %v1269 = vpack.c.bf16 %v1215, %v1213
        %v1270 = vpack.c.bf16 %v1216, %v1214
        %v1271 = vpack.c.bf16 %v1219, %v1217
        %v1272 = vpack.c.bf16 %v1220, %v1218
        %v1273 = vpack.c.bf16 %v1223, %v1221
        %v1274 = vpack.c.bf16 %v1224, %v1222
        %v1275 = vpack.c.bf16 %v1227, %v1225
        %v1276 = vpack.c.bf16 %v1228, %v1226
        %v1277 = vpack.c.bf16 %v1231, %v1229
        %v1278 = vpack.c.bf16 %v1232, %v1230
        %v1279 = vpack.c.bf16 %v1235, %v1233
        %v1280 = vpack.c.bf16 %v1236, %v1234
        %v1281 = vpack.c.bf16 %v1239, %v1237
        %v1282 = vpack.c.bf16 %v1240, %v1238
        %v1283 = vpack.c.bf16 %v1243, %v1241
        %v1284 = vpack.c.bf16 %v1244, %v1242
        %v1285 = vpack.c.bf16 %v1247, %v1245
        %v1286 = vpack.c.bf16 %v1248, %v1246
        %v1287 = vpack.c.bf16 %v1251, %v1249
        %v1288 = vpack.c.bf16 %v1252, %v1250
        %v1289 = vpack.c.bf16 %v1255, %v1253
        %v1290 = vpack.c.bf16 %v1256, %v1254
        %v1291 = vpack.c.bf16 %v1259, %v1257
        %v1292 = vpack.c.bf16 %v1260, %v1258
        %1293 = vmatprep.subr.bf16.mxu0 %v1262
        %1294 = vmatpush1.bf16.msra.mxu0 %v1261
        %1295 = vmatprep.subr.bf16.mxu0 %v1264
        %1296 = vmatpush1.bf16.msra.mxu0 %v1263
        %1297 = vmatprep.subr.bf16.mxu0 %v1266
        %1298 = vmatpush1.bf16.msra.mxu0 %v1265
        %1299 = vmatprep.subr.bf16.mxu0 %v1268
        %1300 = vmatpush1.bf16.msra.mxu0 %v1267
        %1301 = vmatprep.subr.bf16.mxu0 %v1270
        %1302 = vmatpush1.bf16.msra.mxu0 %v1269
        %1303 = vmatprep.subr.bf16.mxu0 %v1272
        %1304 = vmatpush1.bf16.msra.mxu0 %v1271
        %1305 = vmatprep.subr.bf16.mxu0 %v1274
        %1306 = vmatpush1.bf16.msra.mxu0 %v1273
        %1307 = vmatprep.subr.bf16.mxu0 %v1276
        %1308 = vmatpush1.bf16.msra.mxu0 %v1275
        %1309 = vmatprep.subr.bf16.mxu0 %v1278
        %1310 = vmatpush1.bf16.msra.mxu0 %v1277
        %1311 = vmatprep.subr.bf16.mxu0 %v1280
        %1312 = vmatpush1.bf16.msra.mxu0 %v1279
        %1313 = vmatprep.subr.bf16.mxu0 %v1282
        %1314 = vmatpush1.bf16.msra.mxu0 %v1281
        %1315 = vmatprep.subr.bf16.mxu0 %v1284
        %1316 = vmatpush1.bf16.msra.mxu0 %v1283
        %1317 = vmatprep.subr.bf16.mxu0 %v1286
        %1318 = vmatpush1.bf16.msra.mxu0 %v1285
        %1319 = vmatprep.subr.bf16.mxu0 %v1288
        %1320 = vmatpush1.bf16.msra.mxu0 %v1287
        %1321 = vmatprep.subr.bf16.mxu0 %v1290
        %1322 = vmatpush1.bf16.msra.mxu0 %v1289
        %1323 = vmatprep.subr.bf16.mxu0 %v1292
        %1324 = vmatpush1.bf16.msra.mxu0 %v1291
        %1325 = vmatprep.mubr.bf16.mxu0 %v407
        %1326 = vmatmul.mubr.bf16.gmra.mrb[0].mxu0 %v406
        %v1327 = vpop.f32.mrb[0].mxu0
        %v1328 = vadd.f32 0.0, %v1327
        %v1329 = vpop.f32.mrb[0].mxu0
        %v1330 = vadd.f32 0.0, %v1329
        %v1331 = vpop.f32.mrb[0].mxu0
        %v1332 = vadd.f32 0.0, %v1331
        %v1333 = vpop.f32.mrb[0].mxu0
        %v1334 = vadd.f32 0.0, %v1333
        %1335 = vmatprep.mubr.bf16.mxu0 %v409
        %1336 = vmatmul.mubr.bf16.gmra.mrb[0].mxu0 %v408
        %v1337 = vpop.f32.mrb[0].mxu0
        %v1338 = vadd.f32 0.0, %v1337
        %v1339 = vpop.f32.mrb[0].mxu0
        %v1340 = vadd.f32 0.0, %v1339
        %v1341 = vpop.f32.mrb[0].mxu0
        %v1342 = vadd.f32 0.0, %v1341
        %v1343 = vpop.f32.mrb[0].mxu0
        %v1344 = vadd.f32 0.0, %v1343
        %1345 = vdwg.mxu0
        %v1346 = vmul.f32 %v355, %v1328
        %v1347 = vmul.f32 %v356, %v1330
        %v1348 = vmul.f32 %v357, %v1332
        %v1349 = vmul.f32 %v358, %v1334
        %v1350 = vmul.f32 %v359, %v1338
        %v1351 = vmul.f32 %v360, %v1340
        %v1352 = vmul.f32 %v361, %v1342
        %v1353 = vmul.f32 %v362, %v1344
        %v1354 = vadd.f32 %v1346, %v1348
        %v1355 = vadd.f32 %v1354, %v1350
        %v1356 = vadd.f32 %v1355, %v1352
        %v1357 = vrot.slane %v1356, 4
        %v1358 = vadd.f32 %v1356, %v1357
        %v1359 = vrot.slane %v1358, 2
        %v1360 = vadd.f32 %v1358, %v1359
        %v1361 = vrot.slane %v1360, 1
        %v1362 = vadd.f32 %v1360, %v1361
        %v1363 = vadd.f32 %v1347, %v1349
        %v1364 = vadd.f32 %v1363, %v1351
        %v1365 = vadd.f32 %v1364, %v1353
        %v1366 = vrot.slane %v1365, 4
        %v1367 = vadd.f32 %v1365, %v1366
        %v1368 = vrot.slane %v1367, 2
        %v1369 = vadd.f32 %v1367, %v1368
        %v1370 = vrot.slane %v1369, 1
        %v1371 = vadd.f32 %v1369, %v1370
        %v1372 = vmul.f32 %v1362, %v729
        %v1373 = vmul.f32 %v1371, %v729
        %v1374 = vmax.f32 %v730, %v1051
        %v1375 = vmax.f32 %v731, %v1052
        %v1376 = vmax.f32 %v1374, %v1372
        %v1377 = vmax.f32 %v1375, %v1373
        %v1378 = vsub.f32 %v730, %v1376
        %v1379 = vsub.f32 %v731, %v1377
        %v1380 = vmul.f32 %v1378, 1.442695
        %v1381 = vpow.pop %v1380
        %v1382 = vmul.f32 %v1379, 1.442695
        %v1383 = vpow.pop %v1382
        %v1384 = vsub.f32 %v1051, %v1376
        %v1385 = vsub.f32 %v1052, %v1377
        %v1386 = vmul.f32 %v1384, 1.442695
        %v1387 = vpow.pop %v1386
        %v1388 = vmul.f32 %v1385, 1.442695
        %v1389 = vpow.pop %v1388
        %v1390 = vsub.f32 %v1372, %v1376
        %v1391 = vsub.f32 %v1373, %v1377
        %v1392 = vmul.f32 %v1390, 1.442695
        %v1393 = vpow.pop %v1392
        %v1394 = vmul.f32 %v1391, 1.442695
        %v1395 = vpow.pop %v1394
        %v1396 = vadd.f32 %v1381, %v1387
        %v1397 = vadd.f32 %v1383, %v1389
        %v1398 = vadd.f32 %v1396, %v1393
        %v1399 = vadd.f32 %v1397, %v1395
        %v1400 = vrcp.pop %v1398
        %v1401 = vrcp.pop %v1399
        %vm1402 = vcmp.gt.f32.partialorder %v1051, %v730
        %vm1403 = vcmp.gt.f32.partialorder %v1052, %v731
        %v1404 = vsel %vm1402, %v1051, %v730
        %v1405 = vsel %vm1403, %v1052, %v731
        %v1406 = vsel %vm1402, 1, 0
        %v1407 = vsel %vm1403, 1, 0
        %vm1408 = vcmp.gt.f32.partialorder %v1372, %v1404
        %vm1409 = vcmp.gt.f32.partialorder %v1373, %v1405
        %v1410 = vsel %vm1408, 2, %v1406
        %v1411 = vsel %vm1409, 2, %v1407
        %vm1412 = vcmp.eq.s32.totalorder %v1410, 1
        %vm1413 = vcmp.eq.s32.totalorder %v1411, 1
        %v1414 = vsel %vm1412, %v1387, %v1381
        %v1415 = vsel %vm1413, %v1389, %v1383
        %v1416 = vsel %vm1412, %v735, %v413
        %v1417 = vsel %vm1413, %v739, %v417
        %vm1418 = vcmp.eq.s32.totalorder %v1410, 2
        %vm1419 = vcmp.eq.s32.totalorder %v1411, 2
        %v1420 = vsel %vm1418, %v1393, %v1414
        %v1421 = vsel %vm1419, %v1395, %v1415
        %v1422 = vsel %vm1418, %v1056, %v1416
        %v1423 = vsel %vm1419, %v1060, %v1417
        %v1424 = vmul.f32 %v1420, %v1400
        %v1425 = vmul.f32 %v1421, %v1401
        %v1428 = vcombine.low %v1424, %v1425
        %v1430 = vunpack.c.l.s4 1966171168
        %v1431 = vunpack.c.0.s8 %v1430
        %v1432 = vlaneseq
        %v1433 = vshrl.u32 %v1432, 7
        %v1434 = vsub.s32 %v1431, %v1433
        %v1435 = vrot.slane %v1428, %v1434
        %v1437 = vunpack.c.l.s4 1966171168
        %v1438 = vunpack.c.0.s8 %v1437
        %v1439 = vlaneseq
        %v1440 = vshrl.u32 %v1439, 7
        %v1441 = vsub.s32 %v1438, %v1440
        %v1442 = vrot.slane %v1435, %v1441
        %v1444 = vlaneseq
        %vm1445 = vcmp.ge.s32.totalorder %v1444, 0
        %vm1446 = vcmp.lt.s32.totalorder %v1444, 256
        %vm1447 = vmand %vm1445, %vm1446
        %1448 = vst.msk [vmem:[%s333] sm:$0x3] %vm1447, %v1442
        %v1449 = vcombine.low %v1422, %v1423
        %v1451 = vunpack.c.l.s4 1966171168
        %v1452 = vunpack.c.0.s8 %v1451
        %v1453 = vlaneseq
        %v1454 = vshrl.u32 %v1453, 7
        %v1455 = vsub.s32 %v1452, %v1454
        %v1456 = vrot.slane %v1449, %v1455
        %v1458 = vunpack.c.l.s4 1966171168
        %v1459 = vunpack.c.0.s8 %v1458
        %v1460 = vlaneseq
        %v1461 = vshrl.u32 %v1460, 7
        %v1462 = vsub.s32 %v1459, %v1461
        %v1463 = vrot.slane %v1456, %v1462
        %1464 = vst.msk [vmem:[%s340] sm:$0x3] %vm1447, %v1463
        %s1465 = sand.u32 %s155, 1
        %s1466 = scalar_lea.sflag [#allocation5], %s1465
        %s1467 = sand.u32 %s155, 1
        %s1468 = smul.addr %s1467, 2
        %s1469 = scalar_lea.vmem [#allocation8], %s1468
        %s1470 = sand.u32 %s183, 1
        %s1471 = scalar_lea.sflag [#allocation10], %s1470
        %s1472 = sand.u32 %s183, 1
        %s1473 = smul.addr %s1472, 2
        %s1474 = scalar_lea.vmem [#allocation9], %s1473
        // Predicated region
        $region45: #{tpu_custom_call.1} parent=35 // pred_check
          %p1475 = pneg %p165
        $region46: #{tpu_custom_call.1} parent=35 // pred_check_branch
          %1477 = sbr.rel (%p1475) target = $region48
        $region47: #{tpu_custom_call.1} parent=35 // pred_region
          %s1478 = smul.u32 2, %s35
          %s1480 = ssub.s32 32, 32
          %1481 = vsyncadd %s1466, %s1480
          %s1482 = smul.addr %s34, 2
          %s1483 = sadd.s32 %s1478, %s1482
          %s1484 = smul.addr %s1483, 16
          %s1485 = scalar_lea.hbm %s4, %s1484
          %s1487 = sshll.u32 %s1469, 4
          %s1488 = int_to_ptr.vmem [resolvable:$true] %s1487
          %1490 = dma.vmem_to_hbm [thread:$0]  %s1488, 32, %s1485, %s1466
        $region48: #{tpu_custom_call.1} parent=35 // pred_fallthru
          _
        // Predicated region
        $region49: #{tpu_custom_call.1} parent=35 // pred_check
          %p1491 = pneg %p193
        $region50: #{tpu_custom_call.1} parent=35 // pred_check_branch
          %1493 = sbr.rel (%p1491) target = $region52
        $region51: #{tpu_custom_call.1} parent=35 // pred_region
          %s1494 = smul.u32 2, %s35
          %s1496 = ssub.s32 32, 32
          %1497 = vsyncadd %s1471, %s1496
          %s1498 = smul.addr %s34, 2
          %s1499 = sadd.s32 %s1494, %s1498
          %s1500 = smul.addr %s1499, 16
          %s1501 = scalar_lea.hbm %s5, %s1500
          %s1503 = sshll.u32 %s1474, 4
          %s1504 = int_to_ptr.vmem [resolvable:$true] %s1503
          %1506 = dma.vmem_to_hbm [thread:$0]  %s1504, 32, %s1501, %s1471
        $region52: #{tpu_custom_call.1} parent=35 // pred_fallthru
          _
      $region36: #{tpu_custom_call.1} parent=5 // pred_fallthru
        _
      %p1507 = scmp.le.s32.totalorder 2, %s25
      // Predicated region
      $region53: #{tpu_custom_call.1} parent=5 // pred_check
        %p1508 = pneg %p1507
      $region54: #{tpu_custom_call.1} parent=5 // pred_check_branch
        %1510 = sbr.rel (%p1508) target = $region56
      $region55: #{tpu_custom_call.1} parent=5 // pred_region
        %s1511 = ssub.s32 %s25, 2
        // Predicated region
        $region57: #{tpu_custom_call.1} parent=55 // pred_check
          %p1512 = pneg %p171
        $region58: #{tpu_custom_call.1} parent=55 // pred_check_branch
          %1514 = sbr.rel (%p1512) target = $region60
        $region59: #{tpu_custom_call.1} parent=55 // pred_region
          %s1515 = sand.u32 %s156, 1
          %s1516 = scalar_lea.sflag [#allocation5], %s1515
          %s1517 = sand.u32 %s156, 1
          %s1518 = smul.addr %s1517, 2
          %s1519 = scalar_lea.vmem [#allocation8], %s1518
          %1520 = dma.done %s1516, 32
        $region60: #{tpu_custom_call.1} parent=55 // pred_fallthru
          _
        // Predicated region
        $region61: #{tpu_custom_call.1} parent=55 // pred_check
          %p1521 = pneg %p199
        $region62: #{tpu_custom_call.1} parent=55 // pred_check_branch
          %1523 = sbr.rel (%p1521) target = $region64
        $region63: #{tpu_custom_call.1} parent=55 // pred_region
          %s1524 = sand.u32 %s184, 1
          %s1525 = scalar_lea.sflag [#allocation10], %s1524
          %s1526 = sand.u32 %s184, 1
          %s1527 = smul.addr %s1526, 2
          %s1528 = scalar_lea.vmem [#allocation9], %s1527
          %1529 = dma.done %s1525, 32
        $region64: #{tpu_custom_call.1} parent=55 // pred_fallthru
          _
      $region56: #{tpu_custom_call.1} parent=5 // pred_fallthru
        _
    $region6: #{tpu_custom_call.1} parent=1 // loop_footer
      %s29 = sadd.s32 1, %s25
    $region7: #{tpu_custom_call.1} parent=1 // loop_footer_branch
      %24 = sbr.rel target = $region3
    $region8: #{tpu_custom_call.1} parent=1 // loop_exit
      _
    %1530 = vsyncpa [#allocation4], 1
    %s1531 = scalar_lea.sflag [#allocation4], 1
    %1532 = vsyncpa %s1531, 1
    %1533 = vsyncpa [#allocation7], 1
    %s1534 = scalar_lea.sflag [#allocation7], 1
    %1535 = vsyncpa %s1534, 1
    %1536 = vsyncpa [#allocation5], 1
    %s1537 = scalar_lea.sflag [#allocation5], 1
    %1538 = vsyncpa %s1537, 1
    %1539 = vsyncpa [#allocation10], 1
    %s1540 = scalar_lea.sflag [#allocation10], 1
    %1541 = vsyncpa %s1540, 1

</llo_original>
